<compile_context>
chip_gen: v7x
topology: tpu7x:2x2x1
jax: 0.10.0
libtpu: 0.0.40
codegen_flags: <defaults>
</compile_context>

<pallas_src>
import functools

import jax
import jax.numpy as jnp
from jax.experimental import pallas as pl
from jax.experimental.pallas import tpu as pltpu


def _mha_kernel(x_ref, w_in_ref, b_in_ref, w_out_ref, b_out_ref,
                out_ref, attnw_ref, *, num_heads, head_dim, embed_dim):
    """One batch element of multi-head self-attention (all heads fused)."""
    E = embed_dim
    D = head_dim
    H = num_heads

    x = x_ref[0]             # (L, E)
    w_in = w_in_ref[...]     # (E, 3E)  = in_proj_weight.T (Q columns pre-scaled)
    b_in = b_in_ref[...]     # (1, 3E)
    w_out = w_out_ref[...]   # (E, E)   = out_proj_weight.T
    b_out = b_out_ref[...]   # (1, E)

    # Fused Q/K/V projection: one (L,E) x (E,3E) matmul.
    qkv = jnp.dot(x, w_in, preferred_element_type=jnp.float32) + b_in  # (L, 3E)

    ctx_parts = []
    attn_acc = None
    # H = 8 is tiny and static -> unrolled Python loop (LLO sees straight-line code).
    for h in range(H):
        qh = qkv[:, h * D:(h + 1) * D]               # (L, D), Q already scaled
        kh = qkv[:, E + h * D:E + (h + 1) * D]       # (L, D)
        vh = qkv[:, 2 * E + h * D:2 * E + (h + 1) * D]  # (L, D)

        # scores[l, m] = sum_d qh[l, d] * kh[m, d]  (contract last dims)
        scores = jax.lax.dot_general(
            qh, kh, (((1,), (1,)), ((), ())),
            preferred_element_type=jnp.float32)      # (L, L)

        # numerically stable softmax over the key axis (exact divide to keep
        # the averaged-weights 1e-5 tolerance; approx reciprocal is too coarse)
        m = jnp.max(scores, axis=-1, keepdims=True)
        p = jnp.exp(scores - m)
        attn = p / jnp.sum(p, axis=-1, keepdims=True)  # (L, L)

        ctx_parts.append(
            jnp.dot(attn, vh, preferred_element_type=jnp.float32))  # (L, D)
        attn_acc = attn if attn_acc is None else attn_acc + attn

    # Concatenate head contexts (PyTorch head order) and do ONE output projection.
    ctx = jnp.concatenate(ctx_parts, axis=-1)        # (L, E)
    out_ref[0] = jnp.dot(ctx, w_out,
                         preferred_element_type=jnp.float32) + b_out
    attnw_ref[0] = attn_acc * (1.0 / H)


def multihead_self_attention(x_lne, in_proj_weight, in_proj_bias,
                             out_proj_weight, out_proj_bias, num_heads):
    """Equivalent of torch.nn.MultiheadAttention(E, num_heads)(x, x, x)."""
    L, N, E = x_lne.shape
    H = num_heads
    D = E // H
    assert D * H == E

    # Transposed packed in-projection: (E, 3E); columns [0,E) are Q, [E,2E) K,
    # [2E,3E) V. Fold the 1/sqrt(D) attention scale into the Q columns + bias
    # once here (constant-time, outside the hot path).
    scale = 1.0 / (D ** 0.5)
    scale_vec = jnp.concatenate(
        [jnp.full((E,), scale, jnp.float32), jnp.ones((2 * E,), jnp.float32)])
    w_in_t = in_proj_weight.T.astype(jnp.float32) * scale_vec[None, :]  # (E, 3E)
    b_in = (in_proj_bias.astype(jnp.float32) * scale_vec).reshape(1, 3 * E)

    w_out_t = out_proj_weight.T.astype(jnp.float32)   # (E, E)
    b_out = out_proj_bias.astype(jnp.float32).reshape(1, E)

    x_nle = jnp.transpose(x_lne, (1, 0, 2)).astype(jnp.float32)   # (N, L, E)

    kernel = functools.partial(_mha_kernel, num_heads=H, head_dim=D,
                               embed_dim=E)

    out_nle, attnw = pl.pallas_call(
        kernel,
        out_shape=(jax.ShapeDtypeStruct((N, L, E), jnp.float32),
                   jax.ShapeDtypeStruct((N, L, L), jnp.float32)),
        grid=(N,),
        in_specs=[
            pl.BlockSpec((1, L, E), lambda n: (n, 0, 0)),   # x (per batch)
            pl.BlockSpec((E, 3 * E), lambda n: (0, 0)),     # w_in_t (resident)
            pl.BlockSpec((1, 3 * E), lambda n: (0, 0)),     # b_in   (resident)
            pl.BlockSpec((E, E), lambda n: (0, 0)),         # w_out_t(resident)
            pl.BlockSpec((1, E), lambda n: (0, 0)),         # b_out  (resident)
        ],
        out_specs=[
            pl.BlockSpec((1, L, E), lambda n: (n, 0, 0)),   # attn output
            pl.BlockSpec((1, L, L), lambda n: (n, 0, 0)),   # avg attn weights
        ],
        compiler_params=pltpu.CompilerParams(
            dimension_semantics=("parallel",)),   # v7x: one batch per TC
    )(x_nle, w_in_t, b_in, w_out_t, b_out)

    out_lne = jnp.transpose(out_nle, (1, 0, 2))    # back to (L, N, E)
    return out_lne, attnw


def _reference_mha(x, wi, bi, wo, bo, H):
    """Pure-JAX reference matching torch.nn.MultiheadAttention forward."""
    L, N, E = x.shape
    D = E // H
    qkv = jnp.einsum('lne,fe->lnf', x, wi) + bi                    # (L, N, 3E)
    q, k, v = jnp.split(qkv, 3, axis=-1)

    def heads(t):
        return jnp.transpose(t.reshape(L, N, H, D), (1, 2, 0, 3))  # (N, H, L, D)

    q, k, v = heads(q), heads(k), heads(v)
    scores = jnp.einsum('nhld,nhmd->nhlm', q, k) / jnp.sqrt(D)
    attn = jax.nn.softmax(scores, axis=-1)
    ctx = jnp.einsum('nhlm,nhmd->nhld', attn, v)
    ctx = jnp.transpose(ctx, (2, 0, 1, 3)).reshape(L, N, E)
    out = jnp.einsum('lne,fe->lnf', ctx, wo) + bo
    return out, attn.mean(axis=1)


if __name__ == "__main__":
    L, N, E, H = 8, 2, 32, 8   # seq=8, batch=2, embed=32, heads=8 (head_dim=4)

    key = jax.random.PRNGKey(0)
    kx, kw, kb, kwo, kbo = jax.random.split(key, 5)

    # Deterministic synthetic parameters (shapes from MultiheadAttention(32, 8)).
    x = jax.random.normal(kx, (L, N, E), jnp.float32)
    in_proj_weight = jax.random.normal(kw, (3 * E, E), jnp.float32) * 0.1
    in_proj_bias = jax.random.normal(kb, (3 * E,), jnp.float32) * 0.1
    out_proj_weight = jax.random.normal(kwo, (E, E), jnp.float32) * 0.1
    out_proj_bias = jax.random.normal(kbo, (E,), jnp.float32) * 0.1

    out, attn_w = multihead_self_attention(
        x, in_proj_weight, in_proj_bias, out_proj_weight, out_proj_bias, H)
    jax.block_until_ready((out, attn_w))

    ref_out, ref_w = _reference_mha(
        x, in_proj_weight, in_proj_bias, out_proj_weight, out_proj_bias, H)

    assert out.shape == (L, N, E) and attn_w.shape == (N, L, L)
    assert jnp.allclose(out, ref_out, atol=1e-4, rtol=1e-4), "output mismatch"
    assert jnp.allclose(attn_w, ref_w, atol=1e-5, rtol=1e-4), "weights mismatch"

    print("KERNEL_OK")
</pallas_src>

<mosaic_0001>
module attributes {stable_mosaic.version = 11 : i64} {
  func.func @_mha_kernel(%arg0: i32, %arg1: memref<1x8x32xf32, #tpu.memory_space<vmem>>, %arg2: memref<32x96xf32, #tpu.memory_space<vmem>>, %arg3: memref<1x96xf32, #tpu.memory_space<vmem>>, %arg4: memref<32x32xf32, #tpu.memory_space<vmem>>, %arg5: memref<1x32xf32, #tpu.memory_space<vmem>>, %arg6: memref<1x8x32xf32, #tpu.memory_space<vmem>>, %arg7: memref<1x8x8xf32, #tpu.memory_space<vmem>>) attributes {dimension_semantics = [#tpu.dimension_semantics<parallel>], iteration_bounds = array<i64: 2>, scalar_prefetch = 0 : i64, scratch_operands = 0 : i64, tpu.core_type = #tpu.core_type<tc>, window_params = [{transform_indices = @transform_0, window_bounds = array<i64: 1, 8, 32>}, {pipeline_mode = #tpu.pipeline_mode<synchronous>, transform_indices = @transform_1, window_bounds = array<i64: 32, 96>}, {pipeline_mode = #tpu.pipeline_mode<synchronous>, transform_indices = @transform_2, window_bounds = array<i64: 1, 96>}, {pipeline_mode = #tpu.pipeline_mode<synchronous>, transform_indices = @transform_3, window_bounds = array<i64: 32, 32>}, {pipeline_mode = #tpu.pipeline_mode<synchronous>, transform_indices = @transform_4, window_bounds = array<i64: 1, 32>}, {transform_indices = @transform_5, window_bounds = array<i64: 1, 8, 32>}, {transform_indices = @transform_6, window_bounds = array<i64: 1, 8, 8>}]} {
    %c0 = arith.constant 0 : index
    %c0_0 = arith.constant 0 : index
    %c0_1 = arith.constant 0 : index
    %0 = vector.load %arg1[%c0, %c0_0, %c0_1] : memref<1x8x32xf32, #tpu.memory_space<vmem>>, vector<1x8x32xf32>
    %1 = vector.shape_cast %0 : vector<1x8x32xf32> to vector<8x32xf32>
    %c0_2 = arith.constant 0 : index
    %c0_3 = arith.constant 0 : index
    %2 = vector.load %arg2[%c0_2, %c0_3] : memref<32x96xf32, #tpu.memory_space<vmem>>, vector<32x96xf32>
    %c0_4 = arith.constant 0 : index
    %c0_5 = arith.constant 0 : index
    %3 = vector.load %arg3[%c0_4, %c0_5] : memref<1x96xf32, #tpu.memory_space<vmem>>, vector<1x96xf32>
    %c0_6 = arith.constant 0 : index
    %c0_7 = arith.constant 0 : index
    %4 = vector.load %arg4[%c0_6, %c0_7] : memref<32x32xf32, #tpu.memory_space<vmem>>, vector<32x32xf32>
    %c0_8 = arith.constant 0 : index
    %c0_9 = arith.constant 0 : index
    %5 = vector.load %arg5[%c0_8, %c0_9] : memref<1x32xf32, #tpu.memory_space<vmem>>, vector<1x32xf32>
    %cst = arith.constant dense<0.000000e+00> : vector<8x96xf32>
    %6 = tpu.matmul %1, %2, %cst {dimension_numbers = #tpu.dot_dimension_numbers<[1], [0], [0], [1], [0, 0, 1, 1], [], []>} : vector<8x32xf32>, vector<32x96xf32>, vector<8x96xf32> -> vector<8x96xf32>
    %7 = vector.broadcast %3 : vector<1x96xf32> to vector<8x96xf32>
    %8 = arith.addf %6, %7 : vector<8x96xf32>
    %9 = vector.extract_strided_slice %8 {offsets = [0, 0], sizes = [8, 4], strides = [1, 1]} : vector<8x96xf32> to vector<8x4xf32>
    %10 = vector.extract_strided_slice %8 {offsets = [0, 32], sizes = [8, 4], strides = [1, 1]} : vector<8x96xf32> to vector<8x4xf32>
    %11 = vector.extract_strided_slice %8 {offsets = [0, 64], sizes = [8, 4], strides = [1, 1]} : vector<8x96xf32> to vector<8x4xf32>
    %cst_10 = arith.constant dense<0.000000e+00> : vector<8x8xf32>
    %12 = tpu.matmul %9, %10, %cst_10 {dimension_numbers = #tpu.dot_dimension_numbers<[1], [1], [0], [0], [0, 0, 1, 0], [], []>} : vector<8x4xf32>, vector<8x4xf32>, vector<8x8xf32> -> vector<8x8xf32>
    %cst_11 = arith.constant dense<0xFF800000> : vector<8xf32>
    %13 = vector.multi_reduction <maximumf>, %12, %cst_11 [1] : vector<8x8xf32> to vector<8xf32>
    %14 = vector.shape_cast %13 : vector<8xf32> to vector<8x1xf32>
    %15 = vector.broadcast %14 : vector<8x1xf32> to vector<8x8xf32>
    %16 = arith.subf %12, %15 : vector<8x8xf32>
    %17 = math.exp %16 : vector<8x8xf32>
    %cst_12 = arith.constant dense<0.000000e+00> : vector<8xf32>
    %18 = vector.multi_reduction <add>, %17, %cst_12 [1] : vector<8x8xf32> to vector<8xf32>
    %19 = vector.shape_cast %18 : vector<8xf32> to vector<8x1xf32>
    %20 = vector.broadcast %19 : vector<8x1xf32> to vector<8x8xf32>
    %21 = arith.divf %17, %20 : vector<8x8xf32>
    %cst_13 = arith.constant dense<0.000000e+00> : vector<8x4xf32>
    %22 = tpu.matmul %21, %11, %cst_13 {dimension_numbers = #tpu.dot_dimension_numbers<[1], [0], [0], [1], [0, 0, 1, 1], [], []>} : vector<8x8xf32>, vector<8x4xf32>, vector<8x4xf32> -> vector<8x4xf32>
    %23 = vector.extract_strided_slice %8 {offsets = [0, 4], sizes = [8, 4], strides = [1, 1]} : vector<8x96xf32> to vector<8x4xf32>
    %24 = vector.extract_strided_slice %8 {offsets = [0, 36], sizes = [8, 4], strides = [1, 1]} : vector<8x96xf32> to vector<8x4xf32>
    %25 = vector.extract_strided_slice %8 {offsets = [0, 68], sizes = [8, 4], strides = [1, 1]} : vector<8x96xf32> to vector<8x4xf32>
    %cst_14 = arith.constant dense<0.000000e+00> : vector<8x8xf32>
    %26 = tpu.matmul %23, %24, %cst_14 {dimension_numbers = #tpu.dot_dimension_numbers<[1], [1], [0], [0], [0, 0, 1, 0], [], []>} : vector<8x4xf32>, vector<8x4xf32>, vector<8x8xf32> -> vector<8x8xf32>
    %cst_15 = arith.constant dense<0xFF800000> : vector<8xf32>
    %27 = vector.multi_reduction <maximumf>, %26, %cst_15 [1] : vector<8x8xf32> to vector<8xf32>
    %28 = vector.shape_cast %27 : vector<8xf32> to vector<8x1xf32>
    %29 = vector.broadcast %28 : vector<8x1xf32> to vector<8x8xf32>
    %30 = arith.subf %26, %29 : vector<8x8xf32>
    %31 = math.exp %30 : vector<8x8xf32>
    %cst_16 = arith.constant dense<0.000000e+00> : vector<8xf32>
    %32 = vector.multi_reduction <add>, %31, %cst_16 [1] : vector<8x8xf32> to vector<8xf32>
    %33 = vector.shape_cast %32 : vector<8xf32> to vector<8x1xf32>
    %34 = vector.broadcast %33 : vector<8x1xf32> to vector<8x8xf32>
    %35 = arith.divf %31, %34 : vector<8x8xf32>
    %cst_17 = arith.constant dense<0.000000e+00> : vector<8x4xf32>
    %36 = tpu.matmul %35, %25, %cst_17 {dimension_numbers = #tpu.dot_dimension_numbers<[1], [0], [0], [1], [0, 0, 1, 1], [], []>} : vector<8x8xf32>, vector<8x4xf32>, vector<8x4xf32> -> vector<8x4xf32>
    %37 = arith.addf %21, %35 : vector<8x8xf32>
    %38 = vector.extract_strided_slice %8 {offsets = [0, 8], sizes = [8, 4], strides = [1, 1]} : vector<8x96xf32> to vector<8x4xf32>
    %39 = vector.extract_strided_slice %8 {offsets = [0, 40], sizes = [8, 4], strides = [1, 1]} : vector<8x96xf32> to vector<8x4xf32>
    %40 = vector.extract_strided_slice %8 {offsets = [0, 72], sizes = [8, 4], strides = [1, 1]} : vector<8x96xf32> to vector<8x4xf32>
    %cst_18 = arith.constant dense<0.000000e+00> : vector<8x8xf32>
    %41 = tpu.matmul %38, %39, %cst_18 {dimension_numbers = #tpu.dot_dimension_numbers<[1], [1], [0], [0], [0, 0, 1, 0], [], []>} : vector<8x4xf32>, vector<8x4xf32>, vector<8x8xf32> -> vector<8x8xf32>
    %cst_19 = arith.constant dense<0xFF800000> : vector<8xf32>
    %42 = vector.multi_reduction <maximumf>, %41, %cst_19 [1] : vector<8x8xf32> to vector<8xf32>
    %43 = vector.shape_cast %42 : vector<8xf32> to vector<8x1xf32>
    %44 = vector.broadcast %43 : vector<8x1xf32> to vector<8x8xf32>
    %45 = arith.subf %41, %44 : vector<8x8xf32>
    %46 = math.exp %45 : vector<8x8xf32>
    %cst_20 = arith.constant dense<0.000000e+00> : vector<8xf32>
    %47 = vector.multi_reduction <add>, %46, %cst_20 [1] : vector<8x8xf32> to vector<8xf32>
    %48 = vector.shape_cast %47 : vector<8xf32> to vector<8x1xf32>
    %49 = vector.broadcast %48 : vector<8x1xf32> to vector<8x8xf32>
    %50 = arith.divf %46, %49 : vector<8x8xf32>
    %cst_21 = arith.constant dense<0.000000e+00> : vector<8x4xf32>
    %51 = tpu.matmul %50, %40, %cst_21 {dimension_numbers = #tpu.dot_dimension_numbers<[1], [0], [0], [1], [0, 0, 1, 1], [], []>} : vector<8x8xf32>, vector<8x4xf32>, vector<8x4xf32> -> vector<8x4xf32>
    %52 = arith.addf %37, %50 : vector<8x8xf32>
    %53 = vector.extract_strided_slice %8 {offsets = [0, 12], sizes = [8, 4], strides = [1, 1]} : vector<8x96xf32> to vector<8x4xf32>
    %54 = vector.extract_strided_slice %8 {offsets = [0, 44], sizes = [8, 4], strides = [1, 1]} : vector<8x96xf32> to vector<8x4xf32>
    %55 = vector.extract_strided_slice %8 {offsets = [0, 76], sizes = [8, 4], strides = [1, 1]} : vector<8x96xf32> to vector<8x4xf32>
    %cst_22 = arith.constant dense<0.000000e+00> : vector<8x8xf32>
    %56 = tpu.matmul %53, %54, %cst_22 {dimension_numbers = #tpu.dot_dimension_numbers<[1], [1], [0], [0], [0, 0, 1, 0], [], []>} : vector<8x4xf32>, vector<8x4xf32>, vector<8x8xf32> -> vector<8x8xf32>
    %cst_23 = arith.constant dense<0xFF800000> : vector<8xf32>
    %57 = vector.multi_reduction <maximumf>, %56, %cst_23 [1] : vector<8x8xf32> to vector<8xf32>
    %58 = vector.shape_cast %57 : vector<8xf32> to vector<8x1xf32>
    %59 = vector.broadcast %58 : vector<8x1xf32> to vector<8x8xf32>
    %60 = arith.subf %56, %59 : vector<8x8xf32>
    %61 = math.exp %60 : vector<8x8xf32>
    %cst_24 = arith.constant dense<0.000000e+00> : vector<8xf32>
    %62 = vector.multi_reduction <add>, %61, %cst_24 [1] : vector<8x8xf32> to vector<8xf32>
    %63 = vector.shape_cast %62 : vector<8xf32> to vector<8x1xf32>
    %64 = vector.broadcast %63 : vector<8x1xf32> to vector<8x8xf32>
    %65 = arith.divf %61, %64 : vector<8x8xf32>
    %cst_25 = arith.constant dense<0.000000e+00> : vector<8x4xf32>
    %66 = tpu.matmul %65, %55, %cst_25 {dimension_numbers = #tpu.dot_dimension_numbers<[1], [0], [0], [1], [0, 0, 1, 1], [], []>} : vector<8x8xf32>, vector<8x4xf32>, vector<8x4xf32> -> vector<8x4xf32>
    %67 = arith.addf %52, %65 : vector<8x8xf32>
    %68 = vector.extract_strided_slice %8 {offsets = [0, 16], sizes = [8, 4], strides = [1, 1]} : vector<8x96xf32> to vector<8x4xf32>
    %69 = vector.extract_strided_slice %8 {offsets = [0, 48], sizes = [8, 4], strides = [1, 1]} : vector<8x96xf32> to vector<8x4xf32>
    %70 = vector.extract_strided_slice %8 {offsets = [0, 80], sizes = [8, 4], strides = [1, 1]} : vector<8x96xf32> to vector<8x4xf32>
    %cst_26 = arith.constant dense<0.000000e+00> : vector<8x8xf32>
    %71 = tpu.matmul %68, %69, %cst_26 {dimension_numbers = #tpu.dot_dimension_numbers<[1], [1], [0], [0], [0, 0, 1, 0], [], []>} : vector<8x4xf32>, vector<8x4xf32>, vector<8x8xf32> -> vector<8x8xf32>
    %cst_27 = arith.constant dense<0xFF800000> : vector<8xf32>
    %72 = vector.multi_reduction <maximumf>, %71, %cst_27 [1] : vector<8x8xf32> to vector<8xf32>
    %73 = vector.shape_cast %72 : vector<8xf32> to vector<8x1xf32>
    %74 = vector.broadcast %73 : vector<8x1xf32> to vector<8x8xf32>
    %75 = arith.subf %71, %74 : vector<8x8xf32>
    %76 = math.exp %75 : vector<8x8xf32>
    %cst_28 = arith.constant dense<0.000000e+00> : vector<8xf32>
    %77 = vector.multi_reduction <add>, %76, %cst_28 [1] : vector<8x8xf32> to vector<8xf32>
    %78 = vector.shape_cast %77 : vector<8xf32> to vector<8x1xf32>
    %79 = vector.broadcast %78 : vector<8x1xf32> to vector<8x8xf32>
    %80 = arith.divf %76, %79 : vector<8x8xf32>
    %cst_29 = arith.constant dense<0.000000e+00> : vector<8x4xf32>
    %81 = tpu.matmul %80, %70, %cst_29 {dimension_numbers = #tpu.dot_dimension_numbers<[1], [0], [0], [1], [0, 0, 1, 1], [], []>} : vector<8x8xf32>, vector<8x4xf32>, vector<8x4xf32> -> vector<8x4xf32>
    %82 = arith.addf %67, %80 : vector<8x8xf32>
    %83 = vector.extract_strided_slice %8 {offsets = [0, 20], sizes = [8, 4], strides = [1, 1]} : vector<8x96xf32> to vector<8x4xf32>
    %84 = vector.extract_strided_slice %8 {offsets = [0, 52], sizes = [8, 4], strides = [1, 1]} : vector<8x96xf32> to vector<8x4xf32>
    %85 = vector.extract_strided_slice %8 {offsets = [0, 84], sizes = [8, 4], strides = [1, 1]} : vector<8x96xf32> to vector<8x4xf32>
    %cst_30 = arith.constant dense<0.000000e+00> : vector<8x8xf32>
    %86 = tpu.matmul %83, %84, %cst_30 {dimension_numbers = #tpu.dot_dimension_numbers<[1], [1], [0], [0], [0, 0, 1, 0], [], []>} : vector<8x4xf32>, vector<8x4xf32>, vector<8x8xf32> -> vector<8x8xf32>
    %cst_31 = arith.constant dense<0xFF800000> : vector<8xf32>
    %87 = vector.multi_reduction <maximumf>, %86, %cst_31 [1] : vector<8x8xf32> to vector<8xf32>
    %88 = vector.shape_cast %87 : vector<8xf32> to vector<8x1xf32>
    %89 = vector.broadcast %88 : vector<8x1xf32> to vector<8x8xf32>
    %90 = arith.subf %86, %89 : vector<8x8xf32>
    %91 = math.exp %90 : vector<8x8xf32>
    %cst_32 = arith.constant dense<0.000000e+00> : vector<8xf32>
    %92 = vector.multi_reduction <add>, %91, %cst_32 [1] : vector<8x8xf32> to vector<8xf32>
    %93 = vector.shape_cast %92 : vector<8xf32> to vector<8x1xf32>
    %94 = vector.broadcast %93 : vector<8x1xf32> to vector<8x8xf32>
    %95 = arith.divf %91, %94 : vector<8x8xf32>
    %cst_33 = arith.constant dense<0.000000e+00> : vector<8x4xf32>
    %96 = tpu.matmul %95, %85, %cst_33 {dimension_numbers = #tpu.dot_dimension_numbers<[1], [0], [0], [1], [0, 0, 1, 1], [], []>} : vector<8x8xf32>, vector<8x4xf32>, vector<8x4xf32> -> vector<8x4xf32>
    %97 = arith.addf %82, %95 : vector<8x8xf32>
    %98 = vector.extract_strided_slice %8 {offsets = [0, 24], sizes = [8, 4], strides = [1, 1]} : vector<8x96xf32> to vector<8x4xf32>
    %99 = vector.extract_strided_slice %8 {offsets = [0, 56], sizes = [8, 4], strides = [1, 1]} : vector<8x96xf32> to vector<8x4xf32>
    %100 = vector.extract_strided_slice %8 {offsets = [0, 88], sizes = [8, 4], strides = [1, 1]} : vector<8x96xf32> to vector<8x4xf32>
    %cst_34 = arith.constant dense<0.000000e+00> : vector<8x8xf32>
    %101 = tpu.matmul %98, %99, %cst_34 {dimension_numbers = #tpu.dot_dimension_numbers<[1], [1], [0], [0], [0, 0, 1, 0], [], []>} : vector<8x4xf32>, vector<8x4xf32>, vector<8x8xf32> -> vector<8x8xf32>
    %cst_35 = arith.constant dense<0xFF800000> : vector<8xf32>
    %102 = vector.multi_reduction <maximumf>, %101, %cst_35 [1] : vector<8x8xf32> to vector<8xf32>
    %103 = vector.shape_cast %102 : vector<8xf32> to vector<8x1xf32>
    %104 = vector.broadcast %103 : vector<8x1xf32> to vector<8x8xf32>
    %105 = arith.subf %101, %104 : vector<8x8xf32>
    %106 = math.exp %105 : vector<8x8xf32>
    %cst_36 = arith.constant dense<0.000000e+00> : vector<8xf32>
    %107 = vector.multi_reduction <add>, %106, %cst_36 [1] : vector<8x8xf32> to vector<8xf32>
    %108 = vector.shape_cast %107 : vector<8xf32> to vector<8x1xf32>
    %109 = vector.broadcast %108 : vector<8x1xf32> to vector<8x8xf32>
    %110 = arith.divf %106, %109 : vector<8x8xf32>
    %cst_37 = arith.constant dense<0.000000e+00> : vector<8x4xf32>
    %111 = tpu.matmul %110, %100, %cst_37 {dimension_numbers = #tpu.dot_dimension_numbers<[1], [0], [0], [1], [0, 0, 1, 1], [], []>} : vector<8x8xf32>, vector<8x4xf32>, vector<8x4xf32> -> vector<8x4xf32>
    %112 = arith.addf %97, %110 : vector<8x8xf32>
    %113 = vector.extract_strided_slice %8 {offsets = [0, 28], sizes = [8, 4], strides = [1, 1]} : vector<8x96xf32> to vector<8x4xf32>
    %114 = vector.extract_strided_slice %8 {offsets = [0, 60], sizes = [8, 4], strides = [1, 1]} : vector<8x96xf32> to vector<8x4xf32>
    %115 = vector.extract_strided_slice %8 {offsets = [0, 92], sizes = [8, 4], strides = [1, 1]} : vector<8x96xf32> to vector<8x4xf32>
    %cst_38 = arith.constant dense<0.000000e+00> : vector<8x8xf32>
    %116 = tpu.matmul %113, %114, %cst_38 {dimension_numbers = #tpu.dot_dimension_numbers<[1], [1], [0], [0], [0, 0, 1, 0], [], []>} : vector<8x4xf32>, vector<8x4xf32>, vector<8x8xf32> -> vector<8x8xf32>
    %cst_39 = arith.constant dense<0xFF800000> : vector<8xf32>
    %117 = vector.multi_reduction <maximumf>, %116, %cst_39 [1] : vector<8x8xf32> to vector<8xf32>
    %118 = vector.shape_cast %117 : vector<8xf32> to vector<8x1xf32>
    %119 = vector.broadcast %118 : vector<8x1xf32> to vector<8x8xf32>
    %120 = arith.subf %116, %119 : vector<8x8xf32>
    %121 = math.exp %120 : vector<8x8xf32>
    %cst_40 = arith.constant dense<0.000000e+00> : vector<8xf32>
    %122 = vector.multi_reduction <add>, %121, %cst_40 [1] : vector<8x8xf32> to vector<8xf32>
    %123 = vector.shape_cast %122 : vector<8xf32> to vector<8x1xf32>
    %124 = vector.broadcast %123 : vector<8x1xf32> to vector<8x8xf32>
    %125 = arith.divf %121, %124 : vector<8x8xf32>
    %cst_41 = arith.constant dense<0.000000e+00> : vector<8x4xf32>
    %126 = tpu.matmul %125, %115, %cst_41 {dimension_numbers = #tpu.dot_dimension_numbers<[1], [0], [0], [1], [0, 0, 1, 1], [], []>} : vector<8x8xf32>, vector<8x4xf32>, vector<8x4xf32> -> vector<8x4xf32>
    %127 = arith.addf %112, %125 : vector<8x8xf32>
    %128 = tpu.concatenate %22, %36, %51, %66, %81, %96, %111, %126 in 1 : vector<8x4xf32>, vector<8x4xf32>, vector<8x4xf32>, vector<8x4xf32>, vector<8x4xf32>, vector<8x4xf32>, vector<8x4xf32>, vector<8x4xf32> -> vector<8x32xf32>
    %cst_42 = arith.constant dense<0.000000e+00> : vector<8x32xf32>
    %129 = tpu.matmul %128, %4, %cst_42 {dimension_numbers = #tpu.dot_dimension_numbers<[1], [0], [0], [1], [0, 0, 1, 1], [], []>} : vector<8x32xf32>, vector<32x32xf32>, vector<8x32xf32> -> vector<8x32xf32>
    %130 = vector.broadcast %5 : vector<1x32xf32> to vector<8x32xf32>
    %131 = arith.addf %129, %130 : vector<8x32xf32>
    %c0_43 = arith.constant 0 : index
    %c0_44 = arith.constant 0 : index
    %c0_45 = arith.constant 0 : index
    %132 = vector.load %arg6[%c0_43, %c0_44, %c0_45] : memref<1x8x32xf32, #tpu.memory_space<vmem>>, vector<1x8x32xf32>
    %133 = vector.shape_cast %132 : vector<1x8x32xf32> to vector<8x32xf32>
    %134 = vector.shape_cast %131 : vector<8x32xf32> to vector<1x8x32xf32>
    tpu.vector_store %arg6[%c0_43, %c0_44, %c0_45], %134 {strides = array<i32>} : memref<1x8x32xf32, #tpu.memory_space<vmem>>, vector<1x8x32xf32>,
    %cst_46 = arith.constant 1.250000e-01 : f32
    %135 = vector.broadcast %cst_46 : f32 to vector<8x8xf32>
    %136 = arith.mulf %127, %135 : vector<8x8xf32>
    %c0_47 = arith.constant 0 : index
    %c0_48 = arith.constant 0 : index
    %c0_49 = arith.constant 0 : index
    %137 = vector.load %arg7[%c0_47, %c0_48, %c0_49] : memref<1x8x8xf32, #tpu.memory_space<vmem>>, vector<1x8x8xf32>
    %138 = vector.shape_cast %137 : vector<1x8x8xf32> to vector<8x8xf32>
    %139 = vector.shape_cast %136 : vector<8x8xf32> to vector<1x8x8xf32>
    tpu.vector_store %arg7[%c0_47, %c0_48, %c0_49], %139 {strides = array<i32>} : memref<1x8x8xf32, #tpu.memory_space<vmem>>, vector<1x8x8xf32>,
    return
  }
  func.func @transform_0(%arg0: i32) -> (i32, i32, i32) {
    %c0_i32 = arith.constant 0 : i32
    %c0_i32_0 = arith.constant 0 : i32
    %c0_i32_1 = arith.constant 0 : i32
    return %arg0, %c0_i32, %c0_i32_0 : i32, i32, i32
  }
  func.func @transform_1(%arg0: i32) -> (i32, i32) {
    %c0_i32 = arith.constant 0 : i32
    %c0_i32_0 = arith.constant 0 : i32
    %c0_i32_1 = arith.constant 0 : i32
    return %c0_i32, %c0_i32_0 : i32, i32
  }
  func.func @transform_2(%arg0: i32) -> (i32, i32) {
    %c0_i32 = arith.constant 0 : i32
    %c0_i32_0 = arith.constant 0 : i32
    %c0_i32_1 = arith.constant 0 : i32
    return %c0_i32, %c0_i32_0 : i32, i32
  }
  func.func @transform_3(%arg0: i32) -> (i32, i32) {
    %c0_i32 = arith.constant 0 : i32
    %c0_i32_0 = arith.constant 0 : i32
    %c0_i32_1 = arith.constant 0 : i32
    return %c0_i32, %c0_i32_0 : i32, i32
  }
  func.func @transform_4(%arg0: i32) -> (i32, i32) {
    %c0_i32 = arith.constant 0 : i32
    %c0_i32_0 = arith.constant 0 : i32
    %c0_i32_1 = arith.constant 0 : i32
    return %c0_i32, %c0_i32_0 : i32, i32
  }
  func.func @transform_5(%arg0: i32) -> (i32, i32, i32) {
    %c0_i32 = arith.constant 0 : i32
    %c0_i32_0 = arith.constant 0 : i32
    %c0_i32_1 = arith.constant 0 : i32
    return %arg0, %c0_i32, %c0_i32_0 : i32, i32, i32
  }
  func.func @transform_6(%arg0: i32) -> (i32, i32, i32) {
    %c0_i32 = arith.constant 0 : i32
    %c0_i32_0 = arith.constant 0 : i32
    %c0_i32_1 = arith.constant 0 : i32
    return %arg0, %c0_i32, %c0_i32_0 : i32, i32, i32
  }
}

</mosaic_0001>

<llo_original>
// kernel: tpu_custom_call.1
$region0: #{tpu_custom_call.1}
  #allocation0 [shape = 'u32[]', space=smem, size = 0x4, offset = 0x4, fixed_abs, tag = 'smem constant byte address 0x4 - core index']
  #allocation1 [shape = 'u32[144,128]{1,0:T(1,128)}', space=vmem, size = 0x12000, scoped, tag = 'internal scratch']
  %s0 = inlined_call_operand.hbm [shape: f32[2,8,32], index: 0, kind: input, shape index: {}]
  %s1 = inlined_call_operand.hbm [shape: f32[32,96], index: 1, kind: input, shape index: {}]
  %s2 = inlined_call_operand.vmem [shape: f32[1,96], index: 2, kind: input, shape index: {}]
  %s3 = inlined_call_operand.hbm [shape: f32[32,32], index: 3, kind: input, shape index: {}]
  %s4 = inlined_call_operand.vmem [shape: f32[1,32], index: 4, kind: input, shape index: {}]
  %s5 = inlined_call_operand.hbm [shape: f32[2,8,32], index: 5, kind: output, shape index: {0}]
  %s6 = inlined_call_operand.hbm [shape: f32[2,8,8], index: 6, kind: output, shape index: {1}]
  %7 = xla_tuple %s5, %s6
  %s8 = sld [smem:[#allocation0]]
  $region73: #{tpu_custom_call.1} parent=0
    _
  %s10 = ssub.s32 1, %s8
  %s11 = scalar_select 0, %s10, %s8
  $region1: #{tpu_custom_call.1} parent=0
    #allocation2 [shape = 'u8[8192]{0}', space=vmem, size = 0x2000, scoped, tag = 'input window, operand 0']
    #allocation3 [shape = 's32[2]{0}', space=sflag, size = 0x8, scoped, tag = 'scoped memory for tpu_custom_call.1']
    #allocation4 [shape = 's32[2]{0}', space=sflag, size = 0x8, scoped, tag = 'scoped memory for tpu_custom_call.1']
    #allocation5 [shape = 'u8[16384]{0}', space=vmem, size = 0x4000, scoped, tag = 'input window, operand 1, single buffered']
    #allocation6 [shape = 's32[1]{0}', space=sflag, size = 0x4, scoped, tag = 'scoped memory for tpu_custom_call.1']
    #allocation7 [shape = 'u8[16384]{0}', space=vmem, size = 0x4000, scoped, tag = 'input window, operand 3, single buffered']
    #allocation8 [shape = 'u8[8192]{0}', space=vmem, size = 0x2000, scoped, tag = 'output window, operand 0']
    #allocation9 [shape = 'u8[8192]{0}', space=vmem, size = 0x2000, scoped, tag = 'output window, operand 1']
    #allocation10 [shape = 's32[2]{0}', space=sflag, size = 0x8, scoped, tag = 'scoped memory for tpu_custom_call.1']
    %12 = vsyncpa [#allocation3], 0
    %s13 = scalar_lea.sflag [#allocation3], 1
    %14 = vsyncpa %s13, 0
    %15 = vsyncpa [#allocation6], 0
    %16 = vsyncpa [#allocation4], 0
    %s17 = scalar_lea.sflag [#allocation4], 1
    %18 = vsyncpa %s17, 0
    %19 = vsyncpa [#allocation10], 0
    %s20 = scalar_lea.sflag [#allocation10], 1
    %21 = vsyncpa %s20, 0
    loop: start=0, step=1, limit=4
    $region2: #{tpu_custom_call.1} parent=1 // loop_pre_header
      _
    $region3: #{tpu_custom_call.1} parent=1 // loop_header
      %s23 = sphi 0, %s27
      %p24 = scmp.ge.s32.totalorder %s23, 4
      %s33 = sphi 0, %s35
      %s36 = sphi 0, %s33
      %s37 = sphi 0, %s36
      %s53 = sphi 0, %s37
      %s57 = sphi 0, %s57
      %s59 = sphi 0, %s57
      %s60 = sphi 0, %s59
      %s74 = sphi 0, %s60
      %s78 = sphi 0, %s78
      %s80 = sphi 0, %s78
      %s81 = sphi 0, %s80
      %s95 = sphi 0, %s81
      %s99 = sphi 0, %s99
      %s101 = sphi 0, %s99
      %s102 = sphi 0, %s101
      %s116 = sphi 0, %s102
      %s120 = sphi 0, %s120
      %s122 = sphi 0, %s120
      %s123 = sphi 0, %s122
      %s137 = sphi 0, %s123
      %s143 = sphi 0, %s145
      %s146 = sphi 0, %s143
      %s147 = sphi 0, %s146
      %s163 = sphi 0, %s147
      %s169 = sphi 0, %s171
      %s172 = sphi 0, %s169
      %s173 = sphi 0, %s172
      %s189 = sphi 0, %s173
    $region4: #{tpu_custom_call.1} parent=1 // loop_header_branch
      %26 = sbr.rel (%p24) target = $region8
    $region5: #{tpu_custom_call.1} parent=1 // loop_body
      %s28 = ssub.s32 %s23, 1
      %s29 = ssub.s32 %s23, 2
      %s30 = sadd.s32 %s23, 1
      %s31 = ssub.s32 %s23, %s30
      %p32 = scmp.eq.s32.totalorder %s31, 0
      %s34 = sadd.s32 %s33, 1
      %s35 = scalar_select %p32, %s33, %s34
      %p38 = pneg %p32
      %p39 = scmp.eq.s32.totalorder %s23, 1
      %p40 = por %p38, %p39
      %p41 = scmp.ne.s32.totalorder %s33, %s36
      %p42 = scmp.eq.s32.totalorder %s23, 0
      %p43 = por %p41, %p42
      %p44 = scmp.ne.s32.totalorder %s33, %s36
      %p45 = scmp.eq.s32.totalorder %s28, 1
      %p46 = por %p44, %p45
      %p47 = scmp.ne.s32.totalorder %s36, %s37
      %p48 = scmp.eq.s32.totalorder %s28, 0
      %p49 = por %p47, %p48
      %p50 = scmp.ne.s32.totalorder %s36, %s37
      %p51 = scmp.eq.s32.totalorder %s29, 1
      %p52 = por %p50, %p51
      %p54 = scmp.ne.s32.totalorder %s37, %s53
      %p55 = scmp.eq.s32.totalorder %s29, 0
      %p56 = por %p54, %p55
      %s58 = sadd.s32 %s57, 1
      %p61 = scmp.eq.s32.totalorder %s23, 1
      %p62 = scmp.ne.s32.totalorder %s57, %s59
      %p63 = scmp.eq.s32.totalorder %s23, 0
      %p64 = por %p62, %p63
      %p65 = scmp.ne.s32.totalorder %s57, %s59
      %p66 = scmp.eq.s32.totalorder %s28, 1
      %p67 = por %p65, %p66
      %p68 = scmp.ne.s32.totalorder %s59, %s60
      %p69 = scmp.eq.s32.totalorder %s28, 0
      %p70 = por %p68, %p69
      %p71 = scmp.ne.s32.totalorder %s59, %s60
      %p72 = scmp.eq.s32.totalorder %s29, 1
      %p73 = por %p71, %p72
      %p75 = scmp.ne.s32.totalorder %s60, %s74
      %p76 = scmp.eq.s32.totalorder %s29, 0
      %p77 = por %p75, %p76
      %s79 = sadd.s32 %s78, 1
      %p82 = scmp.eq.s32.totalorder %s23, 1
      %p83 = scmp.ne.s32.totalorder %s78, %s80
      %p84 = scmp.eq.s32.totalorder %s23, 0
      %p85 = por %p83, %p84
      %p86 = scmp.ne.s32.totalorder %s78, %s80
      %p87 = scmp.eq.s32.totalorder %s28, 1
      %p88 = por %p86, %p87
      %p89 = scmp.ne.s32.totalorder %s80, %s81
      %p90 = scmp.eq.s32.totalorder %s28, 0
      %p91 = por %p89, %p90
      %p92 = scmp.ne.s32.totalorder %s80, %s81
      %p93 = scmp.eq.s32.totalorder %s29, 1
      %p94 = por %p92, %p93
      %p96 = scmp.ne.s32.totalorder %s81, %s95
      %p97 = scmp.eq.s32.totalorder %s29, 0
      %p98 = por %p96, %p97
      %s100 = sadd.s32 %s99, 1
      %p103 = scmp.eq.s32.totalorder %s23, 1
      %p104 = scmp.ne.s32.totalorder %s99, %s101
      %p105 = scmp.eq.s32.totalorder %s23, 0
      %p106 = por %p104, %p105
      %p107 = scmp.ne.s32.totalorder %s99, %s101
      %p108 = scmp.eq.s32.totalorder %s28, 1
      %p109 = por %p107, %p108
      %p110 = scmp.ne.s32.totalorder %s101, %s102
      %p111 = scmp.eq.s32.totalorder %s28, 0
      %p112 = por %p110, %p111
      %p113 = scmp.ne.s32.totalorder %s101, %s102
      %p114 = scmp.eq.s32.totalorder %s29, 1
      %p115 = por %p113, %p114
      %p117 = scmp.ne.s32.totalorder %s102, %s116
      %p118 = scmp.eq.s32.totalorder %s29, 0
      %p119 = por %p117, %p118
      %s121 = sadd.s32 %s120, 1
      %p124 = scmp.eq.s32.totalorder %s23, 1
      %p125 = scmp.ne.s32.totalorder %s120, %s122
      %p126 = scmp.eq.s32.totalorder %s23, 0
      %p127 = por %p125, %p126
      %p128 = scmp.ne.s32.totalorder %s120, %s122
      %p129 = scmp.eq.s32.totalorder %s28, 1
      %p130 = por %p128, %p129
      %p131 = scmp.ne.s32.totalorder %s122, %s123
      %p132 = scmp.eq.s32.totalorder %s28, 0
      %p133 = por %p131, %p132
      %p134 = scmp.ne.s32.totalorder %s122, %s123
      %p135 = scmp.eq.s32.totalorder %s29, 1
      %p136 = por %p134, %p135
      %p138 = scmp.ne.s32.totalorder %s123, %s137
      %p139 = scmp.eq.s32.totalorder %s29, 0
      %p140 = por %p138, %p139
      %s141 = ssub.s32 %s23, %s30
      %p142 = scmp.eq.s32.totalorder %s141, 0
      %s144 = sadd.s32 %s143, 1
      %s145 = scalar_select %p142, %s143, %s144
      %p148 = pneg %p142
      %p149 = scmp.eq.s32.totalorder %s23, 1
      %p150 = por %p148, %p149
      %p151 = scmp.ne.s32.totalorder %s143, %s146
      %p152 = scmp.eq.s32.totalorder %s23, 0
      %p153 = por %p151, %p152
      %p154 = scmp.ne.s32.totalorder %s143, %s146
      %p155 = scmp.eq.s32.totalorder %s28, 1
      %p156 = por %p154, %p155
      %p157 = scmp.ne.s32.totalorder %s146, %s147
      %p158 = scmp.eq.s32.totalorder %s28, 0
      %p159 = por %p157, %p158
      %p160 = scmp.ne.s32.totalorder %s146, %s147
      %p161 = scmp.eq.s32.totalorder %s29, 1
      %p162 = por %p160, %p161
      %p164 = scmp.ne.s32.totalorder %s147, %s163
      %p165 = scmp.eq.s32.totalorder %s29, 0
      %p166 = por %p164, %p165
      %s167 = ssub.s32 %s23, %s30
      %p168 = scmp.eq.s32.totalorder %s167, 0
      %s170 = sadd.s32 %s169, 1
      %s171 = scalar_select %p168, %s169, %s170
      %p174 = pneg %p168
      %p175 = scmp.eq.s32.totalorder %s23, 1
      %p176 = por %p174, %p175
      %p177 = scmp.ne.s32.totalorder %s169, %s172
      %p178 = scmp.eq.s32.totalorder %s23, 0
      %p179 = por %p177, %p178
      %p180 = scmp.ne.s32.totalorder %s169, %s172
      %p181 = scmp.eq.s32.totalorder %s28, 1
      %p182 = por %p180, %p181
      %p183 = scmp.ne.s32.totalorder %s172, %s173
      %p184 = scmp.eq.s32.totalorder %s28, 0
      %p185 = por %p183, %p184
      %p186 = scmp.ne.s32.totalorder %s172, %s173
      %p187 = scmp.eq.s32.totalorder %s29, 1
      %p188 = por %p186, %p187
      %p190 = scmp.ne.s32.totalorder %s173, %s189
      %p191 = scmp.eq.s32.totalorder %s29, 0
      %p192 = por %p190, %p191
      %p193 = scmp.le.s32.totalorder 1, %s23
      %p194 = scmp.lt.s32.totalorder %s23, 3
      %p195 = pnand %p193, %p194
      %p196 = pneg %p195
      // Predicated region
      $region9: #{tpu_custom_call.1} parent=5 // pred_check
        _
      $region10: #{tpu_custom_call.1} parent=5 // pred_check_branch
        %198 = sbr.rel (%p195) target = $region12
      $region11: #{tpu_custom_call.1} parent=5 // pred_region
        %s199 = ssub.s32 %s23, 1
        // Predicated region
        $region13: #{tpu_custom_call.1} parent=11 // pred_check
          %p200 = pneg %p70
        $region14: #{tpu_custom_call.1} parent=11 // pred_check_branch
          %202 = sbr.rel (%p200) target = $region16
        $region15: #{tpu_custom_call.1} parent=11 // pred_region
          %s204 = ssub.s32 512, 512
          %205 = vsyncadd [#allocation6], %s204
          %s206 = sshll.u32 [#allocation5], 4
          %s207 = int_to_ptr.vmem [resolvable:$true] %s206
          %212 = dma.hbm_to_vmem [thread:$0]  %s1, 512, %s207, [#allocation6], 128, 128, 8
        $region16: #{tpu_custom_call.1} parent=11 // pred_fallthru
          _
        // Predicated region
        $region17: #{tpu_custom_call.1} parent=11 // pred_check
          %p213 = pneg %p91
        $region18: #{tpu_custom_call.1} parent=11 // pred_check_branch
          %215 = sbr.rel (%p213) target = $region20
        $region19: #{tpu_custom_call.1} parent=11 // pred_region
          _
        $region20: #{tpu_custom_call.1} parent=11 // pred_fallthru
          _
        // Predicated region
        $region21: #{tpu_custom_call.1} parent=11 // pred_check
          %p216 = pneg %p112
        $region22: #{tpu_custom_call.1} parent=11 // pred_check_branch
          %218 = sbr.rel (%p216) target = $region24
        $region23: #{tpu_custom_call.1} parent=11 // pred_region
          %s220 = ssub.s32 512, 512
          %221 = vsyncadd [#allocation6], %s220
          %s222 = sshll.u32 [#allocation7], 4
          %s223 = int_to_ptr.vmem [resolvable:$true] %s222
          %228 = dma.hbm_to_vmem [thread:$0]  %s3, 512, %s223, [#allocation6], 128, 128, 8
        $region24: #{tpu_custom_call.1} parent=11 // pred_fallthru
          _
        // Predicated region
        $region25: #{tpu_custom_call.1} parent=11 // pred_check
          %p229 = pneg %p133
        $region26: #{tpu_custom_call.1} parent=11 // pred_check_branch
          %231 = sbr.rel (%p229) target = $region28
        $region27: #{tpu_custom_call.1} parent=11 // pred_region
          _
        $region28: #{tpu_custom_call.1} parent=11 // pred_fallthru
          _
      $region12: #{tpu_custom_call.1} parent=5 // pred_fallthru
        _
      %p232 = scmp.lt.s32.totalorder %s23, 2
      // Predicated region
      $region29: #{tpu_custom_call.1} parent=5 // pred_check
        %p233 = pneg %p232
      $region30: #{tpu_custom_call.1} parent=5 // pred_check_branch
        %235 = sbr.rel (%p233) target = $region32
      $region31: #{tpu_custom_call.1} parent=5 // pred_region
        // Predicated region
        $region33: #{tpu_custom_call.1} parent=31 // pred_check
          %p236 = pneg %p43
        $region34: #{tpu_custom_call.1} parent=31 // pred_check_branch
          %238 = sbr.rel (%p236) target = $region36
        $region35: #{tpu_custom_call.1} parent=31 // pred_region
          %s239 = sand.u32 %s33, 1
          %s240 = scalar_lea.sflag [#allocation3], %s239
          %s241 = sand.u32 %s33, 1
          %s242 = smul.addr %s241, 8
          %s243 = scalar_lea.vmem [#allocation2], %s242
          %s245 = ssub.s32 128, 128
          %246 = vsyncadd %s240, %s245
          %s247 = smul.addr %s23, 128
          %s248 = scalar_lea.hbm %s0, %s247
          %s250 = sshll.u32 %s243, 4
          %s251 = int_to_ptr.vmem [resolvable:$true] %s250
          %253 = dma.hbm_to_vmem [thread:$0]  %s248, 128, %s251, %s240
        $region36: #{tpu_custom_call.1} parent=31 // pred_fallthru
          _
      $region32: #{tpu_custom_call.1} parent=5 // pred_fallthru
        _
      %p254 = scmp.le.s32.totalorder 1, %s23
      %p255 = scmp.lt.s32.totalorder %s23, 3
      %p256 = pnand %p254, %p255
      %p257 = pneg %p256
      // Predicated region
      $region37: #{tpu_custom_call.1} parent=5 // pred_check
        _
      $region38: #{tpu_custom_call.1} parent=5 // pred_check_branch
        %259 = sbr.rel (%p256) target = $region40
      $region39: #{tpu_custom_call.1} parent=5 // pred_region
        %s260 = ssub.s32 %s23, 1
        %s261 = sand.u32 %s36, 1
        %s262 = scalar_lea.sflag [#allocation3], %s261
        %s263 = sand.u32 %s36, 1
        %s264 = smul.addr %s263, 8
        %s265 = scalar_lea.vmem [#allocation2], %s264
        // Predicated region
        $region41: #{tpu_custom_call.1} parent=39 // pred_check
          %p266 = pneg %p49
        $region42: #{tpu_custom_call.1} parent=39 // pred_check_branch
          %268 = sbr.rel (%p266) target = $region44
        $region43: #{tpu_custom_call.1} parent=39 // pred_region
          %269 = dma.done %s262, 128
        $region44: #{tpu_custom_call.1} parent=39 // pred_fallthru
          _
        // Predicated region
        $region45: #{tpu_custom_call.1} parent=39 // pred_check
          %p270 = pneg %p70
        $region46: #{tpu_custom_call.1} parent=39 // pred_check_branch
          %272 = sbr.rel (%p270) target = $region48
        $region47: #{tpu_custom_call.1} parent=39 // pred_region
          %273 = dma.done [#allocation6], 512
        $region48: #{tpu_custom_call.1} parent=39 // pred_fallthru
          _
        // Predicated region
        $region49: #{tpu_custom_call.1} parent=39 // pred_check
          %p274 = pneg %p112
        $region50: #{tpu_custom_call.1} parent=39 // pred_check_branch
          %276 = sbr.rel (%p274) target = $region52
        $region51: #{tpu_custom_call.1} parent=39 // pred_region
          %277 = dma.done [#allocation6], 512
        $region52: #{tpu_custom_call.1} parent=39 // pred_fallthru
          _
        %s278 = sand.u32 %s36, 1
        %s279 = scalar_lea.sflag [#allocation3], %s278
        %s280 = sand.u32 %s36, 1
        %s281 = smul.addr %s280, 8
        %s282 = scalar_lea.vmem [#allocation2], %s281
        %p283 = pneg %p49
        %p284 = pneg %p46
        %p285 = pneg %p70
        %p286 = pneg %p67
        %p287 = pneg %p91
        %p288 = pneg %p88
        %p289 = pneg %p112
        %p290 = pneg %p109
        %p291 = pneg %p133
        %p292 = pneg %p130
        %p293 = pneg %p159
        %p294 = pneg %p156
        %s295 = sand.u32 %s146, 1
        %s296 = scalar_lea.sflag [#allocation4], %s295
        %s297 = sand.u32 %s146, 1
        %s298 = smul.addr %s297, 8
        %s299 = scalar_lea.vmem [#allocation8], %s298
        %p300 = pneg %p185
        %p301 = pneg %p182
        %s302 = sand.u32 %s172, 1
        %s303 = scalar_lea.sflag [#allocation10], %s302
        %s304 = sand.u32 %s172, 1
        %s305 = smul.addr %s304, 8
        %s306 = scalar_lea.vmem [#allocation9], %s305
        %v307 = vld [vmem:[%s265] sm:$0xff]
        %v308 = vld [vmem:[#allocation5] sm:$0xff]
        %v309 = vld [vmem:[#allocation5 + $0x8] sm:$0xff]
        %v310 = vld [vmem:[#allocation5 + $0x10] sm:$0xff]
        %v311 = vld [vmem:[#allocation5 + $0x18] sm:$0xff]
        %v312 = vld [vmem:[%s2] sm:$0x1]
        %v313 = vld [vmem:[#allocation7] sm:$0xff]
        %v314 = vld [vmem:[#allocation7 + $0x8] sm:$0xff]
        %v315 = vld [vmem:[#allocation7 + $0x10] sm:$0xff]
        %v316 = vld [vmem:[#allocation7 + $0x18] sm:$0xff]
        %v317 = vld [vmem:[%s4] sm:$0x1]
        %v319 = vlaneseq
        %v320 = vshrl.u32 %v319, 7
        %v321 = vsub.s32 0, %v320
        %v322 = vrot.slane %v312, %v321
        %vm324 = vcmask 261120
        %v326 = vsel %vm324, %v307, 0
        %328 = vmatprep.subr.mxu0 0.0
        %329 = vmatpush1.msra.mxu0 %v308
        %330 = vmatprep.subr.mxu0 0.0
        %331 = vmatpush1.msra.mxu0 %v309
        %332 = vmatprep.subr.mxu0 0.0
        %333 = vmatpush1.msra.mxu0 %v310
        %334 = vmatprep.subr.mxu0 0.0
        %335 = vmatpush1.msra.mxu0 %v311
        %336 = vmatprep.subr.mxu0 0.0
        %337 = vmatpush1.msra.mxu0 0.0
        %338 = vmatprep.subr.mxu0 0.0
        %339 = vmatpush1.msra.mxu0 0.0
        %340 = vmatprep.subr.mxu0 0.0
        %341 = vmatpush1.msra.mxu0 0.0
        %342 = vmatprep.subr.mxu0 0.0
        %343 = vmatpush1.msra.mxu0 0.0
        %344 = vmatprep.subr.mxu0 0.0
        %345 = vmatpush1.msra.mxu0 0.0
        %346 = vmatprep.subr.mxu0 0.0
        %347 = vmatpush1.msra.mxu0 0.0
        %348 = vmatprep.subr.mxu0 0.0
        %349 = vmatpush1.msra.mxu0 0.0
        %350 = vmatprep.subr.mxu0 0.0
        %351 = vmatpush1.msra.mxu0 0.0
        %352 = vmatprep.subr.mxu0 0.0
        %353 = vmatpush1.msra.mxu0 0.0
        %354 = vmatprep.subr.mxu0 0.0
        %355 = vmatpush1.msra.mxu0 0.0
        %356 = vmatprep.subr.mxu0 0.0
        %357 = vmatpush1.msra.mxu0 0.0
        %358 = vmatprep.subr.mxu0 0.0
        %359 = vmatpush1.msra.mxu0 0.0
        %360 = vmatprep.subr.mxu0 0.0
        %361 = vmatpush1.msra.mxu0 0.0
        %362 = vmatprep.subr.mxu0 0.0
        %363 = vmatpush1.msra.mxu0 0.0
        %364 = vmatprep.subr.mxu0 0.0
        %365 = vmatpush1.msra.mxu0 0.0
        %366 = vmatprep.subr.mxu0 0.0
        %367 = vmatpush1.msra.mxu0 0.0
        %368 = vmatprep.subr.mxu0 0.0
        %369 = vmatpush1.msra.mxu0 0.0
        %370 = vmatprep.subr.mxu0 0.0
        %371 = vmatpush1.msra.mxu0 0.0
        %372 = vmatprep.subr.mxu0 0.0
        %373 = vmatpush1.msra.mxu0 0.0
        %374 = vmatprep.subr.mxu0 0.0
        %375 = vmatpush1.msra.mxu0 0.0
        %376 = vmatprep.subr.mxu0 0.0
        %377 = vmatpush1.msra.mxu0 0.0
        %378 = vmatprep.subr.mxu0 0.0
        %379 = vmatpush1.msra.mxu0 0.0
        %380 = vmatprep.subr.mxu0 0.0
        %381 = vmatpush1.msra.mxu0 0.0
        %382 = vmatprep.subr.mxu0 0.0
        %383 = vmatpush1.msra.mxu0 0.0
        %384 = vmatprep.subr.mxu0 0.0
        %385 = vmatpush1.msra.mxu0 0.0
        %386 = vmatprep.subr.mxu0 0.0
        %387 = vmatpush1.msra.mxu0 0.0
        %388 = vmatprep.subr.mxu0 0.0
        %389 = vmatpush1.msra.mxu0 0.0
        %390 = vmatprep.subr.mxu0 0.0
        %391 = vmatpush1.msra.mxu0 0.0
        %392 = vmatprep.mubr.f32.mxu0 0.0
        %393 = vmatmul.mubr.f32.gmra.mrb[0].mxu0 %v326
        %v394 = vpop.f32.mrb[0].mxu0
        %v395 = vadd.f32 %v322, %v394
        %v396 = vpop.f32.mrb[0].mxu0
        %397 = vdwg.mxu0
        %399 = vrot.lane.b32.xlu0 %v395, 96
        %v400 = vpop.permute.xlu0 %399
        %vm401 = vcmask 31744
        %v402 = vsel %vm401, %v395, 0
        %v404 = vsel %vm401, %v400, 0
        %406 = vmatprep.subr.mxu0 0.0
        %407 = vmatpush1.xpose.msra.mxu0 %v404
        %408 = vmatprep.subr.mxu0 0.0
        %409 = vmatpush1.xpose.msra.mxu0 0.0
        %410 = vmatprep.subr.mxu0 0.0
        %411 = vmatpush1.xpose.msra.mxu0 0.0
        %412 = vmatprep.subr.mxu0 0.0
        %413 = vmatpush1.xpose.msra.mxu0 0.0
        %414 = vmatprep.subr.mxu0 0.0
        %415 = vmatpush1.xpose.msra.mxu0 0.0
        %416 = vmatprep.subr.mxu0 0.0
        %417 = vmatpush1.xpose.msra.mxu0 0.0
        %418 = vmatprep.subr.mxu0 0.0
        %419 = vmatpush1.xpose.msra.mxu0 0.0
        %420 = vmatprep.subr.mxu0 0.0
        %421 = vmatpush1.xpose.msra.mxu0 0.0
        %422 = vmatprep.subr.mxu0 0.0
        %423 = vmatpush1.xpose.msra.mxu0 0.0
        %424 = vmatprep.subr.mxu0 0.0
        %425 = vmatpush1.xpose.msra.mxu0 0.0
        %426 = vmatprep.subr.mxu0 0.0
        %427 = vmatpush1.xpose.msra.mxu0 0.0
        %428 = vmatprep.subr.mxu0 0.0
        %429 = vmatpush1.xpose.msra.mxu0 0.0
        %430 = vmatprep.subr.mxu0 0.0
        %431 = vmatpush1.xpose.msra.mxu0 0.0
        %432 = vmatprep.subr.mxu0 0.0
        %433 = vmatpush1.xpose.msra.mxu0 0.0
        %434 = vmatprep.subr.mxu0 0.0
        %435 = vmatpush1.xpose.msra.mxu0 0.0
        %436 = vmatprep.subr.mxu0 0.0
        %437 = vmatpush1.xpose.msra.mxu0 0.0
        %438 = vmatprep.subr.mxu0 0.0
        %439 = vmatpush1.xpose.msra.mxu0 0.0
        %440 = vmatprep.subr.mxu0 0.0
        %441 = vmatpush1.xpose.msra.mxu0 0.0
        %442 = vmatprep.subr.mxu0 0.0
        %443 = vmatpush1.xpose.msra.mxu0 0.0
        %444 = vmatprep.subr.mxu0 0.0
        %445 = vmatpush1.xpose.msra.mxu0 0.0
        %446 = vmatprep.subr.mxu0 0.0
        %447 = vmatpush1.xpose.msra.mxu0 0.0
        %448 = vmatprep.subr.mxu0 0.0
        %449 = vmatpush1.xpose.msra.mxu0 0.0
        %450 = vmatprep.subr.mxu0 0.0
        %451 = vmatpush1.xpose.msra.mxu0 0.0
        %452 = vmatprep.subr.mxu0 0.0
        %453 = vmatpush1.xpose.msra.mxu0 0.0
        %454 = vmatprep.subr.mxu0 0.0
        %455 = vmatpush1.xpose.msra.mxu0 0.0
        %456 = vmatprep.subr.mxu0 0.0
        %457 = vmatpush1.xpose.msra.mxu0 0.0
        %458 = vmatprep.subr.mxu0 0.0
        %459 = vmatpush1.xpose.msra.mxu0 0.0
        %460 = vmatprep.subr.mxu0 0.0
        %461 = vmatpush1.xpose.msra.mxu0 0.0
        %462 = vmatprep.subr.mxu0 0.0
        %463 = vmatpush1.xpose.msra.mxu0 0.0
        %464 = vmatprep.subr.mxu0 0.0
        %465 = vmatpush1.xpose.msra.mxu0 0.0
        %466 = vmatprep.subr.mxu0 0.0
        %467 = vmatpush1.xpose.msra.mxu0 0.0
        %468 = vmatprep.subr.mxu0 0.0
        %469 = vmatpush1.xpose.msra.mxu0 0.0
        %470 = vmatprep.mubr.f32.mxu0 0.0
        %471 = vmatmul.mubr.f32.gmra.mrb[0].mxu0 %v402
        %v472 = vpop.f32.mrb[0].mxu0
        %v473 = vadd.f32 0.0, %v472
        %v474 = vpop.f32.mrb[0].mxu0
        %475 = vdwg.mxu0
        %vm476 = vcmask 64512
        %v477 = vsel %vm476, %v473, -inf
        %478 = vmax.xlane.f32.xlu0 %v477
        %v479 = vpop.xlane.xlu0 %478
        %v480 = vsub.f32 %v473, %v479
        %v481 = vmul.f32 %v480, 1.442695
        %v482 = vpow.pop %v481
        %v483 = vsel %vm476, %v482, 0.0
        %484 = vadd.xlane.f32.xlu0 %v483
        %v485 = vpop.xlane.xlu0 %484
        %v486 = vrcp.pop %v485
        %v487 = vmul.f32 %v482, %v486
        %488 = vrot.lane.b32.xlu0 %v395, 64
        %v489 = vpop.permute.xlu0 %488
        %v492 = vsel %vm476, %v487, 0
        %494 = vmatprep.subr.mxu0 0.0
        %495 = vmatpush1.msra.mxu0 %v489
        %496 = vmatprep.subr.mxu0 0.0
        %497 = vmatpush1.msra.mxu0 0.0
        %498 = vmatprep.subr.mxu0 0.0
        %499 = vmatpush1.msra.mxu0 0.0
        %500 = vmatprep.subr.mxu0 0.0
        %501 = vmatpush1.msra.mxu0 0.0
        %502 = vmatprep.subr.mxu0 0.0
        %503 = vmatpush1.msra.mxu0 0.0
        %504 = vmatprep.subr.mxu0 0.0
        %505 = vmatpush1.msra.mxu0 0.0
        %506 = vmatprep.subr.mxu0 0.0
        %507 = vmatpush1.msra.mxu0 0.0
        %508 = vmatprep.subr.mxu0 0.0
        %509 = vmatpush1.msra.mxu0 0.0
        %510 = vmatprep.subr.mxu0 0.0
        %511 = vmatpush1.msra.mxu0 0.0
        %512 = vmatprep.subr.mxu0 0.0
        %513 = vmatpush1.msra.mxu0 0.0
        %514 = vmatprep.subr.mxu0 0.0
        %515 = vmatpush1.msra.mxu0 0.0
        %516 = vmatprep.subr.mxu0 0.0
        %517 = vmatpush1.msra.mxu0 0.0
        %518 = vmatprep.subr.mxu0 0.0
        %519 = vmatpush1.msra.mxu0 0.0
        %520 = vmatprep.subr.mxu0 0.0
        %521 = vmatpush1.msra.mxu0 0.0
        %522 = vmatprep.subr.mxu0 0.0
        %523 = vmatpush1.msra.mxu0 0.0
        %524 = vmatprep.subr.mxu0 0.0
        %525 = vmatpush1.msra.mxu0 0.0
        %526 = vmatprep.subr.mxu0 0.0
        %527 = vmatpush1.msra.mxu0 0.0
        %528 = vmatprep.subr.mxu0 0.0
        %529 = vmatpush1.msra.mxu0 0.0
        %530 = vmatprep.subr.mxu0 0.0
        %531 = vmatpush1.msra.mxu0 0.0
        %532 = vmatprep.subr.mxu0 0.0
        %533 = vmatpush1.msra.mxu0 0.0
        %534 = vmatprep.subr.mxu0 0.0
        %535 = vmatpush1.msra.mxu0 0.0
        %536 = vmatprep.subr.mxu0 0.0
        %537 = vmatpush1.msra.mxu0 0.0
        %538 = vmatprep.subr.mxu0 0.0
        %539 = vmatpush1.msra.mxu0 0.0
        %540 = vmatprep.subr.mxu0 0.0
        %541 = vmatpush1.msra.mxu0 0.0
        %542 = vmatprep.subr.mxu0 0.0
        %543 = vmatpush1.msra.mxu0 0.0
        %544 = vmatprep.subr.mxu0 0.0
        %545 = vmatpush1.msra.mxu0 0.0
        %546 = vmatprep.subr.mxu0 0.0
        %547 = vmatpush1.msra.mxu0 0.0
        %548 = vmatprep.subr.mxu0 0.0
        %549 = vmatpush1.msra.mxu0 0.0
        %550 = vmatprep.subr.mxu0 0.0
        %551 = vmatpush1.msra.mxu0 0.0
        %552 = vmatprep.subr.mxu0 0.0
        %553 = vmatpush1.msra.mxu0 0.0
        %554 = vmatprep.subr.mxu0 0.0
        %555 = vmatpush1.msra.mxu0 0.0
        %556 = vmatprep.subr.mxu0 0.0
        %557 = vmatpush1.msra.mxu0 0.0
        %558 = vmatprep.mubr.f32.mxu0 0.0
        %559 = vmatmul.mubr.f32.gmra.mrb[0].mxu0 %v492
        %v560 = vpop.f32.mrb[0].mxu0
        %v561 = vadd.f32 0.0, %v560
        %v562 = vpop.f32.mrb[0].mxu0
        %563 = vdwg.mxu0
        %564 = vrot.lane.b32.xlu0 %v395, 124
        %v565 = vpop.permute.xlu0 %564
        %566 = vrot.lane.b32.xlu0 %v395, 92
        %v567 = vpop.permute.xlu0 %566
        %v568 = vsel %vm401, %v565, 0
        %v570 = vsel %vm401, %v567, 0
        %572 = vmatprep.subr.mxu0 0.0
        %573 = vmatpush1.xpose.msra.mxu0 %v570
        %574 = vmatprep.subr.mxu0 0.0
        %575 = vmatpush1.xpose.msra.mxu0 0.0
        %576 = vmatprep.subr.mxu0 0.0
        %577 = vmatpush1.xpose.msra.mxu0 0.0
        %578 = vmatprep.subr.mxu0 0.0
        %579 = vmatpush1.xpose.msra.mxu0 0.0
        %580 = vmatprep.subr.mxu0 0.0
        %581 = vmatpush1.xpose.msra.mxu0 0.0
        %582 = vmatprep.subr.mxu0 0.0
        %583 = vmatpush1.xpose.msra.mxu0 0.0
        %584 = vmatprep.subr.mxu0 0.0
        %585 = vmatpush1.xpose.msra.mxu0 0.0
        %586 = vmatprep.subr.mxu0 0.0
        %587 = vmatpush1.xpose.msra.mxu0 0.0
        %588 = vmatprep.subr.mxu0 0.0
        %589 = vmatpush1.xpose.msra.mxu0 0.0
        %590 = vmatprep.subr.mxu0 0.0
        %591 = vmatpush1.xpose.msra.mxu0 0.0
        %592 = vmatprep.subr.mxu0 0.0
        %593 = vmatpush1.xpose.msra.mxu0 0.0
        %594 = vmatprep.subr.mxu0 0.0
        %595 = vmatpush1.xpose.msra.mxu0 0.0
        %596 = vmatprep.subr.mxu0 0.0
        %597 = vmatpush1.xpose.msra.mxu0 0.0
        %598 = vmatprep.subr.mxu0 0.0
        %599 = vmatpush1.xpose.msra.mxu0 0.0
        %600 = vmatprep.subr.mxu0 0.0
        %601 = vmatpush1.xpose.msra.mxu0 0.0
        %602 = vmatprep.subr.mxu0 0.0
        %603 = vmatpush1.xpose.msra.mxu0 0.0
        %604 = vmatprep.subr.mxu0 0.0
        %605 = vmatpush1.xpose.msra.mxu0 0.0
        %606 = vmatprep.subr.mxu0 0.0
        %607 = vmatpush1.xpose.msra.mxu0 0.0
        %608 = vmatprep.subr.mxu0 0.0
        %609 = vmatpush1.xpose.msra.mxu0 0.0
        %610 = vmatprep.subr.mxu0 0.0
        %611 = vmatpush1.xpose.msra.mxu0 0.0
        %612 = vmatprep.subr.mxu0 0.0
        %613 = vmatpush1.xpose.msra.mxu0 0.0
        %614 = vmatprep.subr.mxu0 0.0
        %615 = vmatpush1.xpose.msra.mxu0 0.0
        %616 = vmatprep.subr.mxu0 0.0
        %617 = vmatpush1.xpose.msra.mxu0 0.0
        %618 = vmatprep.subr.mxu0 0.0
        %619 = vmatpush1.xpose.msra.mxu0 0.0
        %620 = vmatprep.subr.mxu0 0.0
        %621 = vmatpush1.xpose.msra.mxu0 0.0
        %622 = vmatprep.subr.mxu0 0.0
        %623 = vmatpush1.xpose.msra.mxu0 0.0
        %624 = vmatprep.subr.mxu0 0.0
        %625 = vmatpush1.xpose.msra.mxu0 0.0
        %626 = vmatprep.subr.mxu0 0.0
        %627 = vmatpush1.xpose.msra.mxu0 0.0
        %628 = vmatprep.subr.mxu0 0.0
        %629 = vmatpush1.xpose.msra.mxu0 0.0
        %630 = vmatprep.subr.mxu0 0.0
        %631 = vmatpush1.xpose.msra.mxu0 0.0
        %632 = vmatprep.subr.mxu0 0.0
        %633 = vmatpush1.xpose.msra.mxu0 0.0
        %634 = vmatprep.subr.mxu0 0.0
        %635 = vmatpush1.xpose.msra.mxu0 0.0
        %636 = vmatprep.mubr.f32.mxu0 0.0
        %637 = vmatmul.mubr.f32.gmra.mrb[0].mxu0 %v568
        %v638 = vpop.f32.mrb[0].mxu0
        %v639 = vadd.f32 0.0, %v638
        %v640 = vpop.f32.mrb[0].mxu0
        %641 = vdwg.mxu0
        %v642 = vsel %vm476, %v639, -inf
        %643 = vmax.xlane.f32.xlu0 %v642
        %v644 = vpop.xlane.xlu0 %643
        %v645 = vsub.f32 %v639, %v644
        %v646 = vmul.f32 %v645, 1.442695
        %v647 = vpow.pop %v646
        %v648 = vsel %vm476, %v647, 0.0
        %649 = vadd.xlane.f32.xlu0 %v648
        %v650 = vpop.xlane.xlu0 %649
        %v651 = vrcp.pop %v650
        %v652 = vmul.f32 %v647, %v651
        %653 = vrot.lane.b32.xlu0 %v395, 60
        %v654 = vpop.permute.xlu0 %653
        %v657 = vsel %vm476, %v652, 0
        %659 = vmatprep.subr.mxu0 0.0
        %660 = vmatpush1.msra.mxu0 %v654
        %661 = vmatprep.subr.mxu0 0.0
        %662 = vmatpush1.msra.mxu0 0.0
        %663 = vmatprep.subr.mxu0 0.0
        %664 = vmatpush1.msra.mxu0 0.0
        %665 = vmatprep.subr.mxu0 0.0
        %666 = vmatpush1.msra.mxu0 0.0
        %667 = vmatprep.subr.mxu0 0.0
        %668 = vmatpush1.msra.mxu0 0.0
        %669 = vmatprep.subr.mxu0 0.0
        %670 = vmatpush1.msra.mxu0 0.0
        %671 = vmatprep.subr.mxu0 0.0
        %672 = vmatpush1.msra.mxu0 0.0
        %673 = vmatprep.subr.mxu0 0.0
        %674 = vmatpush1.msra.mxu0 0.0
        %675 = vmatprep.subr.mxu0 0.0
        %676 = vmatpush1.msra.mxu0 0.0
        %677 = vmatprep.subr.mxu0 0.0
        %678 = vmatpush1.msra.mxu0 0.0
        %679 = vmatprep.subr.mxu0 0.0
        %680 = vmatpush1.msra.mxu0 0.0
        %681 = vmatprep.subr.mxu0 0.0
        %682 = vmatpush1.msra.mxu0 0.0
        %683 = vmatprep.subr.mxu0 0.0
        %684 = vmatpush1.msra.mxu0 0.0
        %685 = vmatprep.subr.mxu0 0.0
        %686 = vmatpush1.msra.mxu0 0.0
        %687 = vmatprep.subr.mxu0 0.0
        %688 = vmatpush1.msra.mxu0 0.0
        %689 = vmatprep.subr.mxu0 0.0
        %690 = vmatpush1.msra.mxu0 0.0
        %691 = vmatprep.subr.mxu0 0.0
        %692 = vmatpush1.msra.mxu0 0.0
        %693 = vmatprep.subr.mxu0 0.0
        %694 = vmatpush1.msra.mxu0 0.0
        %695 = vmatprep.subr.mxu0 0.0
        %696 = vmatpush1.msra.mxu0 0.0
        %697 = vmatprep.subr.mxu0 0.0
        %698 = vmatpush1.msra.mxu0 0.0
        %699 = vmatprep.subr.mxu0 0.0
        %700 = vmatpush1.msra.mxu0 0.0
        %701 = vmatprep.subr.mxu0 0.0
        %702 = vmatpush1.msra.mxu0 0.0
        %703 = vmatprep.subr.mxu0 0.0
        %704 = vmatpush1.msra.mxu0 0.0
        %705 = vmatprep.subr.mxu0 0.0
        %706 = vmatpush1.msra.mxu0 0.0
        %707 = vmatprep.subr.mxu0 0.0
        %708 = vmatpush1.msra.mxu0 0.0
        %709 = vmatprep.subr.mxu0 0.0
        %710 = vmatpush1.msra.mxu0 0.0
        %711 = vmatprep.subr.mxu0 0.0
        %712 = vmatpush1.msra.mxu0 0.0
        %713 = vmatprep.subr.mxu0 0.0
        %714 = vmatpush1.msra.mxu0 0.0
        %715 = vmatprep.subr.mxu0 0.0
        %716 = vmatpush1.msra.mxu0 0.0
        %717 = vmatprep.subr.mxu0 0.0
        %718 = vmatpush1.msra.mxu0 0.0
        %719 = vmatprep.subr.mxu0 0.0
        %720 = vmatpush1.msra.mxu0 0.0
        %721 = vmatprep.subr.mxu0 0.0
        %722 = vmatpush1.msra.mxu0 0.0
        %723 = vmatprep.mubr.f32.mxu0 0.0
        %724 = vmatmul.mubr.f32.gmra.mrb[0].mxu0 %v657
        %v725 = vpop.f32.mrb[0].mxu0
        %v726 = vadd.f32 0.0, %v725
        %v727 = vpop.f32.mrb[0].mxu0
        %728 = vdwg.mxu0
        %v729 = vadd.f32 %v487, %v652
        %730 = vrot.lane.b32.xlu0 %v395, 120
        %v731 = vpop.permute.xlu0 %730
        %732 = vrot.lane.b32.xlu0 %v395, 88
        %v733 = vpop.permute.xlu0 %732
        %v734 = vsel %vm401, %v731, 0
        %v736 = vsel %vm401, %v733, 0
        %738 = vmatprep.subr.mxu0 0.0
        %739 = vmatpush1.xpose.msra.mxu0 %v736
        %740 = vmatprep.subr.mxu0 0.0
        %741 = vmatpush1.xpose.msra.mxu0 0.0
        %742 = vmatprep.subr.mxu0 0.0
        %743 = vmatpush1.xpose.msra.mxu0 0.0
        %744 = vmatprep.subr.mxu0 0.0
        %745 = vmatpush1.xpose.msra.mxu0 0.0
        %746 = vmatprep.subr.mxu0 0.0
        %747 = vmatpush1.xpose.msra.mxu0 0.0
        %748 = vmatprep.subr.mxu0 0.0
        %749 = vmatpush1.xpose.msra.mxu0 0.0
        %750 = vmatprep.subr.mxu0 0.0
        %751 = vmatpush1.xpose.msra.mxu0 0.0
        %752 = vmatprep.subr.mxu0 0.0
        %753 = vmatpush1.xpose.msra.mxu0 0.0
        %754 = vmatprep.subr.mxu0 0.0
        %755 = vmatpush1.xpose.msra.mxu0 0.0
        %756 = vmatprep.subr.mxu0 0.0
        %757 = vmatpush1.xpose.msra.mxu0 0.0
        %758 = vmatprep.subr.mxu0 0.0
        %759 = vmatpush1.xpose.msra.mxu0 0.0
        %760 = vmatprep.subr.mxu0 0.0
        %761 = vmatpush1.xpose.msra.mxu0 0.0
        %762 = vmatprep.subr.mxu0 0.0
        %763 = vmatpush1.xpose.msra.mxu0 0.0
        %764 = vmatprep.subr.mxu0 0.0
        %765 = vmatpush1.xpose.msra.mxu0 0.0
        %766 = vmatprep.subr.mxu0 0.0
        %767 = vmatpush1.xpose.msra.mxu0 0.0
        %768 = vmatprep.subr.mxu0 0.0
        %769 = vmatpush1.xpose.msra.mxu0 0.0
        %770 = vmatprep.subr.mxu0 0.0
        %771 = vmatpush1.xpose.msra.mxu0 0.0
        %772 = vmatprep.subr.mxu0 0.0
        %773 = vmatpush1.xpose.msra.mxu0 0.0
        %774 = vmatprep.subr.mxu0 0.0
        %775 = vmatpush1.xpose.msra.mxu0 0.0
        %776 = vmatprep.subr.mxu0 0.0
        %777 = vmatpush1.xpose.msra.mxu0 0.0
        %778 = vmatprep.subr.mxu0 0.0
        %779 = vmatpush1.xpose.msra.mxu0 0.0
        %780 = vmatprep.subr.mxu0 0.0
        %781 = vmatpush1.xpose.msra.mxu0 0.0
        %782 = vmatprep.subr.mxu0 0.0
        %783 = vmatpush1.xpose.msra.mxu0 0.0
        %784 = vmatprep.subr.mxu0 0.0
        %785 = vmatpush1.xpose.msra.mxu0 0.0
        %786 = vmatprep.subr.mxu0 0.0
        %787 = vmatpush1.xpose.msra.mxu0 0.0
        %788 = vmatprep.subr.mxu0 0.0
        %789 = vmatpush1.xpose.msra.mxu0 0.0
        %790 = vmatprep.subr.mxu0 0.0
        %791 = vmatpush1.xpose.msra.mxu0 0.0
        %792 = vmatprep.subr.mxu0 0.0
        %793 = vmatpush1.xpose.msra.mxu0 0.0
        %794 = vmatprep.subr.mxu0 0.0
        %795 = vmatpush1.xpose.msra.mxu0 0.0
        %796 = vmatprep.subr.mxu0 0.0
        %797 = vmatpush1.xpose.msra.mxu0 0.0
        %798 = vmatprep.subr.mxu0 0.0
        %799 = vmatpush1.xpose.msra.mxu0 0.0
        %800 = vmatprep.subr.mxu0 0.0
        %801 = vmatpush1.xpose.msra.mxu0 0.0
        %802 = vmatprep.mubr.f32.mxu0 0.0
        %803 = vmatmul.mubr.f32.gmra.mrb[0].mxu0 %v734
        %v804 = vpop.f32.mrb[0].mxu0
        %v805 = vadd.f32 0.0, %v804
        %v806 = vpop.f32.mrb[0].mxu0
        %807 = vdwg.mxu0
        %v808 = vsel %vm476, %v805, -inf
        %809 = vmax.xlane.f32.xlu0 %v808
        %v810 = vpop.xlane.xlu0 %809
        %v811 = vsub.f32 %v805, %v810
        %v812 = vmul.f32 %v811, 1.442695
        %v813 = vpow.pop %v812
        %v814 = vsel %vm476, %v813, 0.0
        %815 = vadd.xlane.f32.xlu0 %v814
        %v816 = vpop.xlane.xlu0 %815
        %v817 = vrcp.pop %v816
        %v818 = vmul.f32 %v813, %v817
        %819 = vrot.lane.b32.xlu0 %v395, 56
        %v820 = vpop.permute.xlu0 %819
        %v823 = vsel %vm476, %v818, 0
        %825 = vmatprep.subr.mxu0 0.0
        %826 = vmatpush1.msra.mxu0 %v820
        %827 = vmatprep.subr.mxu0 0.0
        %828 = vmatpush1.msra.mxu0 0.0
        %829 = vmatprep.subr.mxu0 0.0
        %830 = vmatpush1.msra.mxu0 0.0
        %831 = vmatprep.subr.mxu0 0.0
        %832 = vmatpush1.msra.mxu0 0.0
        %833 = vmatprep.subr.mxu0 0.0
        %834 = vmatpush1.msra.mxu0 0.0
        %835 = vmatprep.subr.mxu0 0.0
        %836 = vmatpush1.msra.mxu0 0.0
        %837 = vmatprep.subr.mxu0 0.0
        %838 = vmatpush1.msra.mxu0 0.0
        %839 = vmatprep.subr.mxu0 0.0
        %840 = vmatpush1.msra.mxu0 0.0
        %841 = vmatprep.subr.mxu0 0.0
        %842 = vmatpush1.msra.mxu0 0.0
        %843 = vmatprep.subr.mxu0 0.0
        %844 = vmatpush1.msra.mxu0 0.0
        %845 = vmatprep.subr.mxu0 0.0
        %846 = vmatpush1.msra.mxu0 0.0
        %847 = vmatprep.subr.mxu0 0.0
        %848 = vmatpush1.msra.mxu0 0.0
        %849 = vmatprep.subr.mxu0 0.0
        %850 = vmatpush1.msra.mxu0 0.0
        %851 = vmatprep.subr.mxu0 0.0
        %852 = vmatpush1.msra.mxu0 0.0
        %853 = vmatprep.subr.mxu0 0.0
        %854 = vmatpush1.msra.mxu0 0.0
        %855 = vmatprep.subr.mxu0 0.0
        %856 = vmatpush1.msra.mxu0 0.0
        %857 = vmatprep.subr.mxu0 0.0
        %858 = vmatpush1.msra.mxu0 0.0
        %859 = vmatprep.subr.mxu0 0.0
        %860 = vmatpush1.msra.mxu0 0.0
        %861 = vmatprep.subr.mxu0 0.0
        %862 = vmatpush1.msra.mxu0 0.0
        %863 = vmatprep.subr.mxu0 0.0
        %864 = vmatpush1.msra.mxu0 0.0
        %865 = vmatprep.subr.mxu0 0.0
        %866 = vmatpush1.msra.mxu0 0.0
        %867 = vmatprep.subr.mxu0 0.0
        %868 = vmatpush1.msra.mxu0 0.0
        %869 = vmatprep.subr.mxu0 0.0
        %870 = vmatpush1.msra.mxu0 0.0
        %871 = vmatprep.subr.mxu0 0.0
        %872 = vmatpush1.msra.mxu0 0.0
        %873 = vmatprep.subr.mxu0 0.0
        %874 = vmatpush1.msra.mxu0 0.0
        %875 = vmatprep.subr.mxu0 0.0
        %876 = vmatpush1.msra.mxu0 0.0
        %877 = vmatprep.subr.mxu0 0.0
        %878 = vmatpush1.msra.mxu0 0.0
        %879 = vmatprep.subr.mxu0 0.0
        %880 = vmatpush1.msra.mxu0 0.0
        %881 = vmatprep.subr.mxu0 0.0
        %882 = vmatpush1.msra.mxu0 0.0
        %883 = vmatprep.subr.mxu0 0.0
        %884 = vmatpush1.msra.mxu0 0.0
        %885 = vmatprep.subr.mxu0 0.0
        %886 = vmatpush1.msra.mxu0 0.0
        %887 = vmatprep.subr.mxu0 0.0
        %888 = vmatpush1.msra.mxu0 0.0
        %889 = vmatprep.mubr.f32.mxu0 0.0
        %890 = vmatmul.mubr.f32.gmra.mrb[0].mxu0 %v823
        %v891 = vpop.f32.mrb[0].mxu0
        %v892 = vadd.f32 0.0, %v891
        %v893 = vpop.f32.mrb[0].mxu0
        %894 = vdwg.mxu0
        %v895 = vadd.f32 %v729, %v818
        %896 = vrot.lane.b32.xlu0 %v395, 116
        %v897 = vpop.permute.xlu0 %896
        %898 = vrot.lane.b32.xlu0 %v395, 84
        %v899 = vpop.permute.xlu0 %898
        %v900 = vsel %vm401, %v897, 0
        %v902 = vsel %vm401, %v899, 0
        %904 = vmatprep.subr.mxu0 0.0
        %905 = vmatpush1.xpose.msra.mxu0 %v902
        %906 = vmatprep.subr.mxu0 0.0
        %907 = vmatpush1.xpose.msra.mxu0 0.0
        %908 = vmatprep.subr.mxu0 0.0
        %909 = vmatpush1.xpose.msra.mxu0 0.0
        %910 = vmatprep.subr.mxu0 0.0
        %911 = vmatpush1.xpose.msra.mxu0 0.0
        %912 = vmatprep.subr.mxu0 0.0
        %913 = vmatpush1.xpose.msra.mxu0 0.0
        %914 = vmatprep.subr.mxu0 0.0
        %915 = vmatpush1.xpose.msra.mxu0 0.0
        %916 = vmatprep.subr.mxu0 0.0
        %917 = vmatpush1.xpose.msra.mxu0 0.0
        %918 = vmatprep.subr.mxu0 0.0
        %919 = vmatpush1.xpose.msra.mxu0 0.0
        %920 = vmatprep.subr.mxu0 0.0
        %921 = vmatpush1.xpose.msra.mxu0 0.0
        %922 = vmatprep.subr.mxu0 0.0
        %923 = vmatpush1.xpose.msra.mxu0 0.0
        %924 = vmatprep.subr.mxu0 0.0
        %925 = vmatpush1.xpose.msra.mxu0 0.0
        %926 = vmatprep.subr.mxu0 0.0
        %927 = vmatpush1.xpose.msra.mxu0 0.0
        %928 = vmatprep.subr.mxu0 0.0
        %929 = vmatpush1.xpose.msra.mxu0 0.0
        %930 = vmatprep.subr.mxu0 0.0
        %931 = vmatpush1.xpose.msra.mxu0 0.0
        %932 = vmatprep.subr.mxu0 0.0
        %933 = vmatpush1.xpose.msra.mxu0 0.0
        %934 = vmatprep.subr.mxu0 0.0
        %935 = vmatpush1.xpose.msra.mxu0 0.0
        %936 = vmatprep.subr.mxu0 0.0
        %937 = vmatpush1.xpose.msra.mxu0 0.0
        %938 = vmatprep.subr.mxu0 0.0
        %939 = vmatpush1.xpose.msra.mxu0 0.0
        %940 = vmatprep.subr.mxu0 0.0
        %941 = vmatpush1.xpose.msra.mxu0 0.0
        %942 = vmatprep.subr.mxu0 0.0
        %943 = vmatpush1.xpose.msra.mxu0 0.0
        %944 = vmatprep.subr.mxu0 0.0
        %945 = vmatpush1.xpose.msra.mxu0 0.0
        %946 = vmatprep.subr.mxu0 0.0
        %947 = vmatpush1.xpose.msra.mxu0 0.0
        %948 = vmatprep.subr.mxu0 0.0
        %949 = vmatpush1.xpose.msra.mxu0 0.0
        %950 = vmatprep.subr.mxu0 0.0
        %951 = vmatpush1.xpose.msra.mxu0 0.0
        %952 = vmatprep.subr.mxu0 0.0
        %953 = vmatpush1.xpose.msra.mxu0 0.0
        %954 = vmatprep.subr.mxu0 0.0
        %955 = vmatpush1.xpose.msra.mxu0 0.0
        %956 = vmatprep.subr.mxu0 0.0
        %957 = vmatpush1.xpose.msra.mxu0 0.0
        %958 = vmatprep.subr.mxu0 0.0
        %959 = vmatpush1.xpose.msra.mxu0 0.0
        %960 = vmatprep.subr.mxu0 0.0
        %961 = vmatpush1.xpose.msra.mxu0 0.0
        %962 = vmatprep.subr.mxu0 0.0
        %963 = vmatpush1.xpose.msra.mxu0 0.0
        %964 = vmatprep.subr.mxu0 0.0
        %965 = vmatpush1.xpose.msra.mxu0 0.0
        %966 = vmatprep.subr.mxu0 0.0
        %967 = vmatpush1.xpose.msra.mxu0 0.0
        %968 = vmatprep.mubr.f32.mxu0 0.0
        %969 = vmatmul.mubr.f32.gmra.mrb[0].mxu0 %v900
        %v970 = vpop.f32.mrb[0].mxu0
        %v971 = vadd.f32 0.0, %v970
        %v972 = vpop.f32.mrb[0].mxu0
        %973 = vdwg.mxu0
        %v974 = vsel %vm476, %v971, -inf
        %975 = vmax.xlane.f32.xlu0 %v974
        %v976 = vpop.xlane.xlu0 %975
        %v977 = vsub.f32 %v971, %v976
        %v978 = vmul.f32 %v977, 1.442695
        %v979 = vpow.pop %v978
        %v980 = vsel %vm476, %v979, 0.0
        %981 = vadd.xlane.f32.xlu0 %v980
        %v982 = vpop.xlane.xlu0 %981
        %v983 = vrcp.pop %v982
        %v984 = vmul.f32 %v979, %v983
        %985 = vrot.lane.b32.xlu0 %v395, 52
        %v986 = vpop.permute.xlu0 %985
        %v989 = vsel %vm476, %v984, 0
        %991 = vmatprep.subr.mxu0 0.0
        %992 = vmatpush1.msra.mxu0 %v986
        %993 = vmatprep.subr.mxu0 0.0
        %994 = vmatpush1.msra.mxu0 0.0
        %995 = vmatprep.subr.mxu0 0.0
        %996 = vmatpush1.msra.mxu0 0.0
        %997 = vmatprep.subr.mxu0 0.0
        %998 = vmatpush1.msra.mxu0 0.0
        %999 = vmatprep.subr.mxu0 0.0
        %1000 = vmatpush1.msra.mxu0 0.0
        %1001 = vmatprep.subr.mxu0 0.0
        %1002 = vmatpush1.msra.mxu0 0.0
        %1003 = vmatprep.subr.mxu0 0.0
        %1004 = vmatpush1.msra.mxu0 0.0
        %1005 = vmatprep.subr.mxu0 0.0
        %1006 = vmatpush1.msra.mxu0 0.0
        %1007 = vmatprep.subr.mxu0 0.0
        %1008 = vmatpush1.msra.mxu0 0.0
        %1009 = vmatprep.subr.mxu0 0.0
        %1010 = vmatpush1.msra.mxu0 0.0
        %1011 = vmatprep.subr.mxu0 0.0
        %1012 = vmatpush1.msra.mxu0 0.0
        %1013 = vmatprep.subr.mxu0 0.0
        %1014 = vmatpush1.msra.mxu0 0.0
        %1015 = vmatprep.subr.mxu0 0.0
        %1016 = vmatpush1.msra.mxu0 0.0
        %1017 = vmatprep.subr.mxu0 0.0
        %1018 = vmatpush1.msra.mxu0 0.0
        %1019 = vmatprep.subr.mxu0 0.0
        %1020 = vmatpush1.msra.mxu0 0.0
        %1021 = vmatprep.subr.mxu0 0.0
        %1022 = vmatpush1.msra.mxu0 0.0
        %1023 = vmatprep.subr.mxu0 0.0
        %1024 = vmatpush1.msra.mxu0 0.0
        %1025 = vmatprep.subr.mxu0 0.0
        %1026 = vmatpush1.msra.mxu0 0.0
        %1027 = vmatprep.subr.mxu0 0.0
        %1028 = vmatpush1.msra.mxu0 0.0
        %1029 = vmatprep.subr.mxu0 0.0
        %1030 = vmatpush1.msra.mxu0 0.0
        %1031 = vmatprep.subr.mxu0 0.0
        %1032 = vmatpush1.msra.mxu0 0.0
        %1033 = vmatprep.subr.mxu0 0.0
        %1034 = vmatpush1.msra.mxu0 0.0
        %1035 = vmatprep.subr.mxu0 0.0
        %1036 = vmatpush1.msra.mxu0 0.0
        %1037 = vmatprep.subr.mxu0 0.0
        %1038 = vmatpush1.msra.mxu0 0.0
        %1039 = vmatprep.subr.mxu0 0.0
        %1040 = vmatpush1.msra.mxu0 0.0
        %1041 = vmatprep.subr.mxu0 0.0
        %1042 = vmatpush1.msra.mxu0 0.0
        %1043 = vmatprep.subr.mxu0 0.0
        %1044 = vmatpush1.msra.mxu0 0.0
        %1045 = vmatprep.subr.mxu0 0.0
        %1046 = vmatpush1.msra.mxu0 0.0
        %1047 = vmatprep.subr.mxu0 0.0
        %1048 = vmatpush1.msra.mxu0 0.0
        %1049 = vmatprep.subr.mxu0 0.0
        %1050 = vmatpush1.msra.mxu0 0.0
        %1051 = vmatprep.subr.mxu0 0.0
        %1052 = vmatpush1.msra.mxu0 0.0
        %1053 = vmatprep.subr.mxu0 0.0
        %1054 = vmatpush1.msra.mxu0 0.0
        %1055 = vmatprep.mubr.f32.mxu0 0.0
        %1056 = vmatmul.mubr.f32.gmra.mrb[0].mxu0 %v989
        %v1057 = vpop.f32.mrb[0].mxu0
        %v1058 = vadd.f32 0.0, %v1057
        %v1059 = vpop.f32.mrb[0].mxu0
        %1060 = vdwg.mxu0
        %v1061 = vadd.f32 %v895, %v984
        %1062 = vrot.lane.b32.xlu0 %v395, 112
        %v1063 = vpop.permute.xlu0 %1062
        %1064 = vrot.lane.b32.xlu0 %v395, 80
        %v1065 = vpop.permute.xlu0 %1064
        %v1066 = vsel %vm401, %v1063, 0
        %v1068 = vsel %vm401, %v1065, 0
        %1070 = vmatprep.subr.mxu0 0.0
        %1071 = vmatpush1.xpose.msra.mxu0 %v1068
        %1072 = vmatprep.subr.mxu0 0.0
        %1073 = vmatpush1.xpose.msra.mxu0 0.0
        %1074 = vmatprep.subr.mxu0 0.0
        %1075 = vmatpush1.xpose.msra.mxu0 0.0
        %1076 = vmatprep.subr.mxu0 0.0
        %1077 = vmatpush1.xpose.msra.mxu0 0.0
        %1078 = vmatprep.subr.mxu0 0.0
        %1079 = vmatpush1.xpose.msra.mxu0 0.0
        %1080 = vmatprep.subr.mxu0 0.0
        %1081 = vmatpush1.xpose.msra.mxu0 0.0
        %1082 = vmatprep.subr.mxu0 0.0
        %1083 = vmatpush1.xpose.msra.mxu0 0.0
        %1084 = vmatprep.subr.mxu0 0.0
        %1085 = vmatpush1.xpose.msra.mxu0 0.0
        %1086 = vmatprep.subr.mxu0 0.0
        %1087 = vmatpush1.xpose.msra.mxu0 0.0
        %1088 = vmatprep.subr.mxu0 0.0
        %1089 = vmatpush1.xpose.msra.mxu0 0.0
        %1090 = vmatprep.subr.mxu0 0.0
        %1091 = vmatpush1.xpose.msra.mxu0 0.0
        %1092 = vmatprep.subr.mxu0 0.0
        %1093 = vmatpush1.xpose.msra.mxu0 0.0
        %1094 = vmatprep.subr.mxu0 0.0
        %1095 = vmatpush1.xpose.msra.mxu0 0.0
        %1096 = vmatprep.subr.mxu0 0.0
        %1097 = vmatpush1.xpose.msra.mxu0 0.0
        %1098 = vmatprep.subr.mxu0 0.0
        %1099 = vmatpush1.xpose.msra.mxu0 0.0
        %1100 = vmatprep.subr.mxu0 0.0
        %1101 = vmatpush1.xpose.msra.mxu0 0.0
        %1102 = vmatprep.subr.mxu0 0.0
        %1103 = vmatpush1.xpose.msra.mxu0 0.0
        %1104 = vmatprep.subr.mxu0 0.0
        %1105 = vmatpush1.xpose.msra.mxu0 0.0
        %1106 = vmatprep.subr.mxu0 0.0
        %1107 = vmatpush1.xpose.msra.mxu0 0.0
        %1108 = vmatprep.subr.mxu0 0.0
        %1109 = vmatpush1.xpose.msra.mxu0 0.0
        %1110 = vmatprep.subr.mxu0 0.0
        %1111 = vmatpush1.xpose.msra.mxu0 0.0
        %1112 = vmatprep.subr.mxu0 0.0
        %1113 = vmatpush1.xpose.msra.mxu0 0.0
        %1114 = vmatprep.subr.mxu0 0.0
        %1115 = vmatpush1.xpose.msra.mxu0 0.0
        %1116 = vmatprep.subr.mxu0 0.0
        %1117 = vmatpush1.xpose.msra.mxu0 0.0
        %1118 = vmatprep.subr.mxu0 0.0
        %1119 = vmatpush1.xpose.msra.mxu0 0.0
        %1120 = vmatprep.subr.mxu0 0.0
        %1121 = vmatpush1.xpose.msra.mxu0 0.0
        %1122 = vmatprep.subr.mxu0 0.0
        %1123 = vmatpush1.xpose.msra.mxu0 0.0
        %1124 = vmatprep.subr.mxu0 0.0
        %1125 = vmatpush1.xpose.msra.mxu0 0.0
        %1126 = vmatprep.subr.mxu0 0.0
        %1127 = vmatpush1.xpose.msra.mxu0 0.0
        %1128 = vmatprep.subr.mxu0 0.0
        %1129 = vmatpush1.xpose.msra.mxu0 0.0
        %1130 = vmatprep.subr.mxu0 0.0
        %1131 = vmatpush1.xpose.msra.mxu0 0.0
        %1132 = vmatprep.subr.mxu0 0.0
        %1133 = vmatpush1.xpose.msra.mxu0 0.0
        %1134 = vmatprep.mubr.f32.mxu0 0.0
        %1135 = vmatmul.mubr.f32.gmra.mrb[0].mxu0 %v1066
        %v1136 = vpop.f32.mrb[0].mxu0
        %v1137 = vadd.f32 0.0, %v1136
        %v1138 = vpop.f32.mrb[0].mxu0
        %1139 = vdwg.mxu0
        %v1140 = vsel %vm476, %v1137, -inf
        %1141 = vmax.xlane.f32.xlu0 %v1140
        %v1142 = vpop.xlane.xlu0 %1141
        %v1143 = vsub.f32 %v1137, %v1142
        %v1144 = vmul.f32 %v1143, 1.442695
        %v1145 = vpow.pop %v1144
        %v1146 = vsel %vm476, %v1145, 0.0
        %1147 = vadd.xlane.f32.xlu0 %v1146
        %v1148 = vpop.xlane.xlu0 %1147
        %v1149 = vrcp.pop %v1148
        %v1150 = vmul.f32 %v1145, %v1149
        %1151 = vrot.lane.b32.xlu0 %v395, 48
        %v1152 = vpop.permute.xlu0 %1151
        %v1155 = vsel %vm476, %v1150, 0
        %1157 = vmatprep.subr.mxu0 0.0
        %1158 = vmatpush1.msra.mxu0 %v1152
        %1159 = vmatprep.subr.mxu0 0.0
        %1160 = vmatpush1.msra.mxu0 0.0
        %1161 = vmatprep.subr.mxu0 0.0
        %1162 = vmatpush1.msra.mxu0 0.0
        %1163 = vmatprep.subr.mxu0 0.0
        %1164 = vmatpush1.msra.mxu0 0.0
        %1165 = vmatprep.subr.mxu0 0.0
        %1166 = vmatpush1.msra.mxu0 0.0
        %1167 = vmatprep.subr.mxu0 0.0
        %1168 = vmatpush1.msra.mxu0 0.0
        %1169 = vmatprep.subr.mxu0 0.0
        %1170 = vmatpush1.msra.mxu0 0.0
        %1171 = vmatprep.subr.mxu0 0.0
        %1172 = vmatpush1.msra.mxu0 0.0
        %1173 = vmatprep.subr.mxu0 0.0
        %1174 = vmatpush1.msra.mxu0 0.0
        %1175 = vmatprep.subr.mxu0 0.0
        %1176 = vmatpush1.msra.mxu0 0.0
        %1177 = vmatprep.subr.mxu0 0.0
        %1178 = vmatpush1.msra.mxu0 0.0
        %1179 = vmatprep.subr.mxu0 0.0
        %1180 = vmatpush1.msra.mxu0 0.0
        %1181 = vmatprep.subr.mxu0 0.0
        %1182 = vmatpush1.msra.mxu0 0.0
        %1183 = vmatprep.subr.mxu0 0.0
        %1184 = vmatpush1.msra.mxu0 0.0
        %1185 = vmatprep.subr.mxu0 0.0
        %1186 = vmatpush1.msra.mxu0 0.0
        %1187 = vmatprep.subr.mxu0 0.0
        %1188 = vmatpush1.msra.mxu0 0.0
        %1189 = vmatprep.subr.mxu0 0.0
        %1190 = vmatpush1.msra.mxu0 0.0
        %1191 = vmatprep.subr.mxu0 0.0
        %1192 = vmatpush1.msra.mxu0 0.0
        %1193 = vmatprep.subr.mxu0 0.0
        %1194 = vmatpush1.msra.mxu0 0.0
        %1195 = vmatprep.subr.mxu0 0.0
        %1196 = vmatpush1.msra.mxu0 0.0
        %1197 = vmatprep.subr.mxu0 0.0
        %1198 = vmatpush1.msra.mxu0 0.0
        %1199 = vmatprep.subr.mxu0 0.0
        %1200 = vmatpush1.msra.mxu0 0.0
        %1201 = vmatprep.subr.mxu0 0.0
        %1202 = vmatpush1.msra.mxu0 0.0
        %1203 = vmatprep.subr.mxu0 0.0
        %1204 = vmatpush1.msra.mxu0 0.0
        %1205 = vmatprep.subr.mxu0 0.0
        %1206 = vmatpush1.msra.mxu0 0.0
        %1207 = vmatprep.subr.mxu0 0.0
        %1208 = vmatpush1.msra.mxu0 0.0
        %1209 = vmatprep.subr.mxu0 0.0
        %1210 = vmatpush1.msra.mxu0 0.0
        %1211 = vmatprep.subr.mxu0 0.0
        %1212 = vmatpush1.msra.mxu0 0.0
        %1213 = vmatprep.subr.mxu0 0.0
        %1214 = vmatpush1.msra.mxu0 0.0
        %1215 = vmatprep.subr.mxu0 0.0
        %1216 = vmatpush1.msra.mxu0 0.0
        %1217 = vmatprep.subr.mxu0 0.0
        %1218 = vmatpush1.msra.mxu0 0.0
        %1219 = vmatprep.subr.mxu0 0.0
        %1220 = vmatpush1.msra.mxu0 0.0
        %1221 = vmatprep.mubr.f32.mxu0 0.0
        %1222 = vmatmul.mubr.f32.gmra.mrb[0].mxu0 %v1155
        %v1223 = vpop.f32.mrb[0].mxu0
        %v1224 = vadd.f32 0.0, %v1223
        %v1225 = vpop.f32.mrb[0].mxu0
        %1226 = vdwg.mxu0
        %v1227 = vadd.f32 %v1061, %v1150
        %1228 = vrot.lane.b32.xlu0 %v395, 108
        %v1229 = vpop.permute.xlu0 %1228
        %1230 = vrot.lane.b32.xlu0 %v395, 76
        %v1231 = vpop.permute.xlu0 %1230
        %v1232 = vsel %vm401, %v1229, 0
        %v1234 = vsel %vm401, %v1231, 0
        %1236 = vmatprep.subr.mxu0 0.0
        %1237 = vmatpush1.xpose.msra.mxu0 %v1234
        %1238 = vmatprep.subr.mxu0 0.0
        %1239 = vmatpush1.xpose.msra.mxu0 0.0
        %1240 = vmatprep.subr.mxu0 0.0
        %1241 = vmatpush1.xpose.msra.mxu0 0.0
        %1242 = vmatprep.subr.mxu0 0.0
        %1243 = vmatpush1.xpose.msra.mxu0 0.0
        %1244 = vmatprep.subr.mxu0 0.0
        %1245 = vmatpush1.xpose.msra.mxu0 0.0
        %1246 = vmatprep.subr.mxu0 0.0
        %1247 = vmatpush1.xpose.msra.mxu0 0.0
        %1248 = vmatprep.subr.mxu0 0.0
        %1249 = vmatpush1.xpose.msra.mxu0 0.0
        %1250 = vmatprep.subr.mxu0 0.0
        %1251 = vmatpush1.xpose.msra.mxu0 0.0
        %1252 = vmatprep.subr.mxu0 0.0
        %1253 = vmatpush1.xpose.msra.mxu0 0.0
        %1254 = vmatprep.subr.mxu0 0.0
        %1255 = vmatpush1.xpose.msra.mxu0 0.0
        %1256 = vmatprep.subr.mxu0 0.0
        %1257 = vmatpush1.xpose.msra.mxu0 0.0
        %1258 = vmatprep.subr.mxu0 0.0
        %1259 = vmatpush1.xpose.msra.mxu0 0.0
        %1260 = vmatprep.subr.mxu0 0.0
        %1261 = vmatpush1.xpose.msra.mxu0 0.0
        %1262 = vmatprep.subr.mxu0 0.0
        %1263 = vmatpush1.xpose.msra.mxu0 0.0
        %1264 = vmatprep.subr.mxu0 0.0
        %1265 = vmatpush1.xpose.msra.mxu0 0.0
        %1266 = vmatprep.subr.mxu0 0.0
        %1267 = vmatpush1.xpose.msra.mxu0 0.0
        %1268 = vmatprep.subr.mxu0 0.0
        %1269 = vmatpush1.xpose.msra.mxu0 0.0
        %1270 = vmatprep.subr.mxu0 0.0
        %1271 = vmatpush1.xpose.msra.mxu0 0.0
        %1272 = vmatprep.subr.mxu0 0.0
        %1273 = vmatpush1.xpose.msra.mxu0 0.0
        %1274 = vmatprep.subr.mxu0 0.0
        %1275 = vmatpush1.xpose.msra.mxu0 0.0
        %1276 = vmatprep.subr.mxu0 0.0
        %1277 = vmatpush1.xpose.msra.mxu0 0.0
        %1278 = vmatprep.subr.mxu0 0.0
        %1279 = vmatpush1.xpose.msra.mxu0 0.0
        %1280 = vmatprep.subr.mxu0 0.0
        %1281 = vmatpush1.xpose.msra.mxu0 0.0
        %1282 = vmatprep.subr.mxu0 0.0
        %1283 = vmatpush1.xpose.msra.mxu0 0.0
        %1284 = vmatprep.subr.mxu0 0.0
        %1285 = vmatpush1.xpose.msra.mxu0 0.0
        %1286 = vmatprep.subr.mxu0 0.0
        %1287 = vmatpush1.xpose.msra.mxu0 0.0
        %1288 = vmatprep.subr.mxu0 0.0
        %1289 = vmatpush1.xpose.msra.mxu0 0.0
        %1290 = vmatprep.subr.mxu0 0.0
        %1291 = vmatpush1.xpose.msra.mxu0 0.0
        %1292 = vmatprep.subr.mxu0 0.0
        %1293 = vmatpush1.xpose.msra.mxu0 0.0
        %1294 = vmatprep.subr.mxu0 0.0
        %1295 = vmatpush1.xpose.msra.mxu0 0.0
        %1296 = vmatprep.subr.mxu0 0.0
        %1297 = vmatpush1.xpose.msra.mxu0 0.0
        %1298 = vmatprep.subr.mxu0 0.0
        %1299 = vmatpush1.xpose.msra.mxu0 0.0
        %1300 = vmatprep.mubr.f32.mxu0 0.0
        %1301 = vmatmul.mubr.f32.gmra.mrb[0].mxu0 %v1232
        %v1302 = vpop.f32.mrb[0].mxu0
        %v1303 = vadd.f32 0.0, %v1302
        %v1304 = vpop.f32.mrb[0].mxu0
        %1305 = vdwg.mxu0
        %v1306 = vsel %vm476, %v1303, -inf
        %1307 = vmax.xlane.f32.xlu0 %v1306
        %v1308 = vpop.xlane.xlu0 %1307
        %v1309 = vsub.f32 %v1303, %v1308
        %v1310 = vmul.f32 %v1309, 1.442695
        %v1311 = vpow.pop %v1310
        %v1312 = vsel %vm476, %v1311, 0.0
        %1313 = vadd.xlane.f32.xlu0 %v1312
        %v1314 = vpop.xlane.xlu0 %1313
        %v1315 = vrcp.pop %v1314
        %v1316 = vmul.f32 %v1311, %v1315
        %1317 = vrot.lane.b32.xlu0 %v395, 44
        %v1318 = vpop.permute.xlu0 %1317
        %v1321 = vsel %vm476, %v1316, 0
        %1323 = vmatprep.subr.mxu0 0.0
        %1324 = vmatpush1.msra.mxu0 %v1318
        %1325 = vmatprep.subr.mxu0 0.0
        %1326 = vmatpush1.msra.mxu0 0.0
        %1327 = vmatprep.subr.mxu0 0.0
        %1328 = vmatpush1.msra.mxu0 0.0
        %1329 = vmatprep.subr.mxu0 0.0
        %1330 = vmatpush1.msra.mxu0 0.0
        %1331 = vmatprep.subr.mxu0 0.0
        %1332 = vmatpush1.msra.mxu0 0.0
        %1333 = vmatprep.subr.mxu0 0.0
        %1334 = vmatpush1.msra.mxu0 0.0
        %1335 = vmatprep.subr.mxu0 0.0
        %1336 = vmatpush1.msra.mxu0 0.0
        %1337 = vmatprep.subr.mxu0 0.0
        %1338 = vmatpush1.msra.mxu0 0.0
        %1339 = vmatprep.subr.mxu0 0.0
        %1340 = vmatpush1.msra.mxu0 0.0
        %1341 = vmatprep.subr.mxu0 0.0
        %1342 = vmatpush1.msra.mxu0 0.0
        %1343 = vmatprep.subr.mxu0 0.0
        %1344 = vmatpush1.msra.mxu0 0.0
        %1345 = vmatprep.subr.mxu0 0.0
        %1346 = vmatpush1.msra.mxu0 0.0
        %1347 = vmatprep.subr.mxu0 0.0
        %1348 = vmatpush1.msra.mxu0 0.0
        %1349 = vmatprep.subr.mxu0 0.0
        %1350 = vmatpush1.msra.mxu0 0.0
        %1351 = vmatprep.subr.mxu0 0.0
        %1352 = vmatpush1.msra.mxu0 0.0
        %1353 = vmatprep.subr.mxu0 0.0
        %1354 = vmatpush1.msra.mxu0 0.0
        %1355 = vmatprep.subr.mxu0 0.0
        %1356 = vmatpush1.msra.mxu0 0.0
        %1357 = vmatprep.subr.mxu0 0.0
        %1358 = vmatpush1.msra.mxu0 0.0
        %1359 = vmatprep.subr.mxu0 0.0
        %1360 = vmatpush1.msra.mxu0 0.0
        %1361 = vmatprep.subr.mxu0 0.0
        %1362 = vmatpush1.msra.mxu0 0.0
        %1363 = vmatprep.subr.mxu0 0.0
        %1364 = vmatpush1.msra.mxu0 0.0
        %1365 = vmatprep.subr.mxu0 0.0
        %1366 = vmatpush1.msra.mxu0 0.0
        %1367 = vmatprep.subr.mxu0 0.0
        %1368 = vmatpush1.msra.mxu0 0.0
        %1369 = vmatprep.subr.mxu0 0.0
        %1370 = vmatpush1.msra.mxu0 0.0
        %1371 = vmatprep.subr.mxu0 0.0
        %1372 = vmatpush1.msra.mxu0 0.0
        %1373 = vmatprep.subr.mxu0 0.0
        %1374 = vmatpush1.msra.mxu0 0.0
        %1375 = vmatprep.subr.mxu0 0.0
        %1376 = vmatpush1.msra.mxu0 0.0
        %1377 = vmatprep.subr.mxu0 0.0
        %1378 = vmatpush1.msra.mxu0 0.0
        %1379 = vmatprep.subr.mxu0 0.0
        %1380 = vmatpush1.msra.mxu0 0.0
        %1381 = vmatprep.subr.mxu0 0.0
        %1382 = vmatpush1.msra.mxu0 0.0
        %1383 = vmatprep.subr.mxu0 0.0
        %1384 = vmatpush1.msra.mxu0 0.0
        %1385 = vmatprep.subr.mxu0 0.0
        %1386 = vmatpush1.msra.mxu0 0.0
        %1387 = vmatprep.mubr.f32.mxu0 0.0
        %1388 = vmatmul.mubr.f32.gmra.mrb[0].mxu0 %v1321
        %v1389 = vpop.f32.mrb[0].mxu0
        %v1390 = vadd.f32 0.0, %v1389
        %v1391 = vpop.f32.mrb[0].mxu0
        %1392 = vdwg.mxu0
        %v1393 = vadd.f32 %v1227, %v1316
        %1394 = vrot.lane.b32.xlu0 %v395, 104
        %v1395 = vpop.permute.xlu0 %1394
        %1396 = vrot.lane.b32.xlu0 %v395, 72
        %v1397 = vpop.permute.xlu0 %1396
        %v1398 = vsel %vm401, %v1395, 0
        %v1400 = vsel %vm401, %v1397, 0
        %1402 = vmatprep.subr.mxu0 0.0
        %1403 = vmatpush1.xpose.msra.mxu0 %v1400
        %1404 = vmatprep.subr.mxu0 0.0
        %1405 = vmatpush1.xpose.msra.mxu0 0.0
        %1406 = vmatprep.subr.mxu0 0.0
        %1407 = vmatpush1.xpose.msra.mxu0 0.0
        %1408 = vmatprep.subr.mxu0 0.0
        %1409 = vmatpush1.xpose.msra.mxu0 0.0
        %1410 = vmatprep.subr.mxu0 0.0
        %1411 = vmatpush1.xpose.msra.mxu0 0.0
        %1412 = vmatprep.subr.mxu0 0.0
        %1413 = vmatpush1.xpose.msra.mxu0 0.0
        %1414 = vmatprep.subr.mxu0 0.0
        %1415 = vmatpush1.xpose.msra.mxu0 0.0
        %1416 = vmatprep.subr.mxu0 0.0
        %1417 = vmatpush1.xpose.msra.mxu0 0.0
        %1418 = vmatprep.subr.mxu0 0.0
        %1419 = vmatpush1.xpose.msra.mxu0 0.0
        %1420 = vmatprep.subr.mxu0 0.0
        %1421 = vmatpush1.xpose.msra.mxu0 0.0
        %1422 = vmatprep.subr.mxu0 0.0
        %1423 = vmatpush1.xpose.msra.mxu0 0.0
        %1424 = vmatprep.subr.mxu0 0.0
        %1425 = vmatpush1.xpose.msra.mxu0 0.0
        %1426 = vmatprep.subr.mxu0 0.0
        %1427 = vmatpush1.xpose.msra.mxu0 0.0
        %1428 = vmatprep.subr.mxu0 0.0
        %1429 = vmatpush1.xpose.msra.mxu0 0.0
        %1430 = vmatprep.subr.mxu0 0.0
        %1431 = vmatpush1.xpose.msra.mxu0 0.0
        %1432 = vmatprep.subr.mxu0 0.0
        %1433 = vmatpush1.xpose.msra.mxu0 0.0
        %1434 = vmatprep.subr.mxu0 0.0
        %1435 = vmatpush1.xpose.msra.mxu0 0.0
        %1436 = vmatprep.subr.mxu0 0.0
        %1437 = vmatpush1.xpose.msra.mxu0 0.0
        %1438 = vmatprep.subr.mxu0 0.0
        %1439 = vmatpush1.xpose.msra.mxu0 0.0
        %1440 = vmatprep.subr.mxu0 0.0
        %1441 = vmatpush1.xpose.msra.mxu0 0.0
        %1442 = vmatprep.subr.mxu0 0.0
        %1443 = vmatpush1.xpose.msra.mxu0 0.0
        %1444 = vmatprep.subr.mxu0 0.0
        %1445 = vmatpush1.xpose.msra.mxu0 0.0
        %1446 = vmatprep.subr.mxu0 0.0
        %1447 = vmatpush1.xpose.msra.mxu0 0.0
        %1448 = vmatprep.subr.mxu0 0.0
        %1449 = vmatpush1.xpose.msra.mxu0 0.0
        %1450 = vmatprep.subr.mxu0 0.0
        %1451 = vmatpush1.xpose.msra.mxu0 0.0
        %1452 = vmatprep.subr.mxu0 0.0
        %1453 = vmatpush1.xpose.msra.mxu0 0.0
        %1454 = vmatprep.subr.mxu0 0.0
        %1455 = vmatpush1.xpose.msra.mxu0 0.0
        %1456 = vmatprep.subr.mxu0 0.0
        %1457 = vmatpush1.xpose.msra.mxu0 0.0
        %1458 = vmatprep.subr.mxu0 0.0
        %1459 = vmatpush1.xpose.msra.mxu0 0.0
        %1460 = vmatprep.subr.mxu0 0.0
        %1461 = vmatpush1.xpose.msra.mxu0 0.0
        %1462 = vmatprep.subr.mxu0 0.0
        %1463 = vmatpush1.xpose.msra.mxu0 0.0
        %1464 = vmatprep.subr.mxu0 0.0
        %1465 = vmatpush1.xpose.msra.mxu0 0.0
        %1466 = vmatprep.mubr.f32.mxu0 0.0
        %1467 = vmatmul.mubr.f32.gmra.mrb[0].mxu0 %v1398
        %v1468 = vpop.f32.mrb[0].mxu0
        %v1469 = vadd.f32 0.0, %v1468
        %v1470 = vpop.f32.mrb[0].mxu0
        %1471 = vdwg.mxu0
        %v1472 = vsel %vm476, %v1469, -inf
        %1473 = vmax.xlane.f32.xlu0 %v1472
        %v1474 = vpop.xlane.xlu0 %1473
        %v1475 = vsub.f32 %v1469, %v1474
        %v1476 = vmul.f32 %v1475, 1.442695
        %v1477 = vpow.pop %v1476
        %v1478 = vsel %vm476, %v1477, 0.0
        %1479 = vadd.xlane.f32.xlu0 %v1478
        %v1480 = vpop.xlane.xlu0 %1479
        %v1481 = vrcp.pop %v1480
        %v1482 = vmul.f32 %v1477, %v1481
        %1483 = vrot.lane.b32.xlu0 %v395, 40
        %v1484 = vpop.permute.xlu0 %1483
        %v1487 = vsel %vm476, %v1482, 0
        %1489 = vmatprep.subr.mxu0 0.0
        %1490 = vmatpush1.msra.mxu0 %v1484
        %1491 = vmatprep.subr.mxu0 0.0
        %1492 = vmatpush1.msra.mxu0 0.0
        %1493 = vmatprep.subr.mxu0 0.0
        %1494 = vmatpush1.msra.mxu0 0.0
        %1495 = vmatprep.subr.mxu0 0.0
        %1496 = vmatpush1.msra.mxu0 0.0
        %1497 = vmatprep.subr.mxu0 0.0
        %1498 = vmatpush1.msra.mxu0 0.0
        %1499 = vmatprep.subr.mxu0 0.0
        %1500 = vmatpush1.msra.mxu0 0.0
        %1501 = vmatprep.subr.mxu0 0.0
        %1502 = vmatpush1.msra.mxu0 0.0
        %1503 = vmatprep.subr.mxu0 0.0
        %1504 = vmatpush1.msra.mxu0 0.0
        %1505 = vmatprep.subr.mxu0 0.0
        %1506 = vmatpush1.msra.mxu0 0.0
        %1507 = vmatprep.subr.mxu0 0.0
        %1508 = vmatpush1.msra.mxu0 0.0
        %1509 = vmatprep.subr.mxu0 0.0
        %1510 = vmatpush1.msra.mxu0 0.0
        %1511 = vmatprep.subr.mxu0 0.0
        %1512 = vmatpush1.msra.mxu0 0.0
        %1513 = vmatprep.subr.mxu0 0.0
        %1514 = vmatpush1.msra.mxu0 0.0
        %1515 = vmatprep.subr.mxu0 0.0
        %1516 = vmatpush1.msra.mxu0 0.0
        %1517 = vmatprep.subr.mxu0 0.0
        %1518 = vmatpush1.msra.mxu0 0.0
        %1519 = vmatprep.subr.mxu0 0.0
        %1520 = vmatpush1.msra.mxu0 0.0
        %1521 = vmatprep.subr.mxu0 0.0
        %1522 = vmatpush1.msra.mxu0 0.0
        %1523 = vmatprep.subr.mxu0 0.0
        %1524 = vmatpush1.msra.mxu0 0.0
        %1525 = vmatprep.subr.mxu0 0.0
        %1526 = vmatpush1.msra.mxu0 0.0
        %1527 = vmatprep.subr.mxu0 0.0
        %1528 = vmatpush1.msra.mxu0 0.0
        %1529 = vmatprep.subr.mxu0 0.0
        %1530 = vmatpush1.msra.mxu0 0.0
        %1531 = vmatprep.subr.mxu0 0.0
        %1532 = vmatpush1.msra.mxu0 0.0
        %1533 = vmatprep.subr.mxu0 0.0
        %1534 = vmatpush1.msra.mxu0 0.0
        %1535 = vmatprep.subr.mxu0 0.0
        %1536 = vmatpush1.msra.mxu0 0.0
        %1537 = vmatprep.subr.mxu0 0.0
        %1538 = vmatpush1.msra.mxu0 0.0
        %1539 = vmatprep.subr.mxu0 0.0
        %1540 = vmatpush1.msra.mxu0 0.0
        %1541 = vmatprep.subr.mxu0 0.0
        %1542 = vmatpush1.msra.mxu0 0.0
        %1543 = vmatprep.subr.mxu0 0.0
        %1544 = vmatpush1.msra.mxu0 0.0
        %1545 = vmatprep.subr.mxu0 0.0
        %1546 = vmatpush1.msra.mxu0 0.0
        %1547 = vmatprep.subr.mxu0 0.0
        %1548 = vmatpush1.msra.mxu0 0.0
        %1549 = vmatprep.subr.mxu0 0.0
        %1550 = vmatpush1.msra.mxu0 0.0
        %1551 = vmatprep.subr.mxu0 0.0
        %1552 = vmatpush1.msra.mxu0 0.0
        %1553 = vmatprep.mubr.f32.mxu0 0.0
        %1554 = vmatmul.mubr.f32.gmra.mrb[0].mxu0 %v1487
        %v1555 = vpop.f32.mrb[0].mxu0
        %v1556 = vadd.f32 0.0, %v1555
        %v1557 = vpop.f32.mrb[0].mxu0
        %1558 = vdwg.mxu0
        %v1559 = vadd.f32 %v1393, %v1482
        %1560 = vrot.lane.b32.xlu0 %v395, 100
        %v1561 = vpop.permute.xlu0 %1560
        %1562 = vrot.lane.b32.xlu0 %v395, 68
        %v1563 = vpop.permute.xlu0 %1562
        %v1564 = vsel %vm401, %v1561, 0
        %v1566 = vsel %vm401, %v1563, 0
        %1568 = vmatprep.subr.mxu0 0.0
        %1569 = vmatpush1.xpose.msra.mxu0 %v1566
        %1570 = vmatprep.subr.mxu0 0.0
        %1571 = vmatpush1.xpose.msra.mxu0 0.0
        %1572 = vmatprep.subr.mxu0 0.0
        %1573 = vmatpush1.xpose.msra.mxu0 0.0
        %1574 = vmatprep.subr.mxu0 0.0
        %1575 = vmatpush1.xpose.msra.mxu0 0.0
        %1576 = vmatprep.subr.mxu0 0.0
        %1577 = vmatpush1.xpose.msra.mxu0 0.0
        %1578 = vmatprep.subr.mxu0 0.0
        %1579 = vmatpush1.xpose.msra.mxu0 0.0
        %1580 = vmatprep.subr.mxu0 0.0
        %1581 = vmatpush1.xpose.msra.mxu0 0.0
        %1582 = vmatprep.subr.mxu0 0.0
        %1583 = vmatpush1.xpose.msra.mxu0 0.0
        %1584 = vmatprep.subr.mxu0 0.0
        %1585 = vmatpush1.xpose.msra.mxu0 0.0
        %1586 = vmatprep.subr.mxu0 0.0
        %1587 = vmatpush1.xpose.msra.mxu0 0.0
        %1588 = vmatprep.subr.mxu0 0.0
        %1589 = vmatpush1.xpose.msra.mxu0 0.0
        %1590 = vmatprep.subr.mxu0 0.0
        %1591 = vmatpush1.xpose.msra.mxu0 0.0
        %1592 = vmatprep.subr.mxu0 0.0
        %1593 = vmatpush1.xpose.msra.mxu0 0.0
        %1594 = vmatprep.subr.mxu0 0.0
        %1595 = vmatpush1.xpose.msra.mxu0 0.0
        %1596 = vmatprep.subr.mxu0 0.0
        %1597 = vmatpush1.xpose.msra.mxu0 0.0
        %1598 = vmatprep.subr.mxu0 0.0
        %1599 = vmatpush1.xpose.msra.mxu0 0.0
        %1600 = vmatprep.subr.mxu0 0.0
        %1601 = vmatpush1.xpose.msra.mxu0 0.0
        %1602 = vmatprep.subr.mxu0 0.0
        %1603 = vmatpush1.xpose.msra.mxu0 0.0
        %1604 = vmatprep.subr.mxu0 0.0
        %1605 = vmatpush1.xpose.msra.mxu0 0.0
        %1606 = vmatprep.subr.mxu0 0.0
        %1607 = vmatpush1.xpose.msra.mxu0 0.0
        %1608 = vmatprep.subr.mxu0 0.0
        %1609 = vmatpush1.xpose.msra.mxu0 0.0
        %1610 = vmatprep.subr.mxu0 0.0
        %1611 = vmatpush1.xpose.msra.mxu0 0.0
        %1612 = vmatprep.subr.mxu0 0.0
        %1613 = vmatpush1.xpose.msra.mxu0 0.0
        %1614 = vmatprep.subr.mxu0 0.0
        %1615 = vmatpush1.xpose.msra.mxu0 0.0
        %1616 = vmatprep.subr.mxu0 0.0
        %1617 = vmatpush1.xpose.msra.mxu0 0.0
        %1618 = vmatprep.subr.mxu0 0.0
        %1619 = vmatpush1.xpose.msra.mxu0 0.0
        %1620 = vmatprep.subr.mxu0 0.0
        %1621 = vmatpush1.xpose.msra.mxu0 0.0
        %1622 = vmatprep.subr.mxu0 0.0
        %1623 = vmatpush1.xpose.msra.mxu0 0.0
        %1624 = vmatprep.subr.mxu0 0.0
        %1625 = vmatpush1.xpose.msra.mxu0 0.0
        %1626 = vmatprep.subr.mxu0 0.0
        %1627 = vmatpush1.xpose.msra.mxu0 0.0
        %1628 = vmatprep.subr.mxu0 0.0
        %1629 = vmatpush1.xpose.msra.mxu0 0.0
        %1630 = vmatprep.subr.mxu0 0.0
        %1631 = vmatpush1.xpose.msra.mxu0 0.0
        %1632 = vmatprep.mubr.f32.mxu0 0.0
        %1633 = vmatmul.mubr.f32.gmra.mrb[0].mxu0 %v1564
        %v1634 = vpop.f32.mrb[0].mxu0
        %v1635 = vadd.f32 0.0, %v1634
        %v1636 = vpop.f32.mrb[0].mxu0
        %1637 = vdwg.mxu0
        %v1638 = vsel %vm476, %v1635, -inf
        %1639 = vmax.xlane.f32.xlu0 %v1638
        %v1640 = vpop.xlane.xlu0 %1639
        %v1641 = vsub.f32 %v1635, %v1640
        %v1642 = vmul.f32 %v1641, 1.442695
        %v1643 = vpow.pop %v1642
        %v1644 = vsel %vm476, %v1643, 0.0
        %1645 = vadd.xlane.f32.xlu0 %v1644
        %v1646 = vpop.xlane.xlu0 %1645
        %v1647 = vrcp.pop %v1646
        %v1648 = vmul.f32 %v1643, %v1647
        %1649 = vrot.lane.b32.xlu0 %v395, 36
        %v1650 = vpop.permute.xlu0 %1649
        %v1653 = vsel %vm476, %v1648, 0
        %1655 = vmatprep.subr.mxu0 0.0
        %1656 = vmatpush1.msra.mxu0 %v1650
        %1657 = vmatprep.subr.mxu0 0.0
        %1658 = vmatpush1.msra.mxu0 0.0
        %1659 = vmatprep.subr.mxu0 0.0
        %1660 = vmatpush1.msra.mxu0 0.0
        %1661 = vmatprep.subr.mxu0 0.0
        %1662 = vmatpush1.msra.mxu0 0.0
        %1663 = vmatprep.subr.mxu0 0.0
        %1664 = vmatpush1.msra.mxu0 0.0
        %1665 = vmatprep.subr.mxu0 0.0
        %1666 = vmatpush1.msra.mxu0 0.0
        %1667 = vmatprep.subr.mxu0 0.0
        %1668 = vmatpush1.msra.mxu0 0.0
        %1669 = vmatprep.subr.mxu0 0.0
        %1670 = vmatpush1.msra.mxu0 0.0
        %1671 = vmatprep.subr.mxu0 0.0
        %1672 = vmatpush1.msra.mxu0 0.0
        %1673 = vmatprep.subr.mxu0 0.0
        %1674 = vmatpush1.msra.mxu0 0.0
        %1675 = vmatprep.subr.mxu0 0.0
        %1676 = vmatpush1.msra.mxu0 0.0
        %1677 = vmatprep.subr.mxu0 0.0
        %1678 = vmatpush1.msra.mxu0 0.0
        %1679 = vmatprep.subr.mxu0 0.0
        %1680 = vmatpush1.msra.mxu0 0.0
        %1681 = vmatprep.subr.mxu0 0.0
        %1682 = vmatpush1.msra.mxu0 0.0
        %1683 = vmatprep.subr.mxu0 0.0
        %1684 = vmatpush1.msra.mxu0 0.0
        %1685 = vmatprep.subr.mxu0 0.0
        %1686 = vmatpush1.msra.mxu0 0.0
        %1687 = vmatprep.subr.mxu0 0.0
        %1688 = vmatpush1.msra.mxu0 0.0
        %1689 = vmatprep.subr.mxu0 0.0
        %1690 = vmatpush1.msra.mxu0 0.0
        %1691 = vmatprep.subr.mxu0 0.0
        %1692 = vmatpush1.msra.mxu0 0.0
        %1693 = vmatprep.subr.mxu0 0.0
        %1694 = vmatpush1.msra.mxu0 0.0
        %1695 = vmatprep.subr.mxu0 0.0
        %1696 = vmatpush1.msra.mxu0 0.0
        %1697 = vmatprep.subr.mxu0 0.0
        %1698 = vmatpush1.msra.mxu0 0.0
        %1699 = vmatprep.subr.mxu0 0.0
        %1700 = vmatpush1.msra.mxu0 0.0
        %1701 = vmatprep.subr.mxu0 0.0
        %1702 = vmatpush1.msra.mxu0 0.0
        %1703 = vmatprep.subr.mxu0 0.0
        %1704 = vmatpush1.msra.mxu0 0.0
        %1705 = vmatprep.subr.mxu0 0.0
        %1706 = vmatpush1.msra.mxu0 0.0
        %1707 = vmatprep.subr.mxu0 0.0
        %1708 = vmatpush1.msra.mxu0 0.0
        %1709 = vmatprep.subr.mxu0 0.0
        %1710 = vmatpush1.msra.mxu0 0.0
        %1711 = vmatprep.subr.mxu0 0.0
        %1712 = vmatpush1.msra.mxu0 0.0
        %1713 = vmatprep.subr.mxu0 0.0
        %1714 = vmatpush1.msra.mxu0 0.0
        %1715 = vmatprep.subr.mxu0 0.0
        %1716 = vmatpush1.msra.mxu0 0.0
        %1717 = vmatprep.subr.mxu0 0.0
        %1718 = vmatpush1.msra.mxu0 0.0
        %1719 = vmatprep.mubr.f32.mxu0 0.0
        %1720 = vmatmul.mubr.f32.gmra.mrb[0].mxu0 %v1653
        %v1721 = vpop.f32.mrb[0].mxu0
        %v1722 = vadd.f32 0.0, %v1721
        %v1723 = vpop.f32.mrb[0].mxu0
        %1724 = vdwg.mxu0
        %v1725 = vadd.f32 %v1559, %v1648
        %1727 = vrot.lane.b32.xlu0 %v726, 4
        %v1728 = vpop.permute.xlu0 %1727
        %1731 = vrot.lane.b32.xlu0 %v892, 8
        %v1732 = vpop.permute.xlu0 %1731
        %1735 = vrot.lane.b32.xlu0 %v1058, 12
        %v1736 = vpop.permute.xlu0 %1735
        %1739 = vrot.lane.b32.xlu0 %v1224, 16
        %v1740 = vpop.permute.xlu0 %1739
        %1743 = vrot.lane.b32.xlu0 %v1390, 20
        %v1744 = vpop.permute.xlu0 %1743
        %1747 = vrot.lane.b32.xlu0 %v1556, 24
        %v1748 = vpop.permute.xlu0 %1747
        %1751 = vrot.lane.b32.xlu0 %v1722, 28
        %v1752 = vpop.permute.xlu0 %1751
        %v1754 = vsel %vm401, %v561, %v1728
        %v1755 = vsel %vm476, %v1754, %v1732
        %vm1756 = vcmask 97280
        %v1757 = vsel %vm1756, %v1755, %v1736
        %vm1758 = vcmask 130048
        %v1759 = vsel %vm1758, %v1757, %v1740
        %vm1760 = vcmask 162816
        %v1761 = vsel %vm1760, %v1759, %v1744
        %vm1762 = vcmask 195584
        %v1763 = vsel %vm1762, %v1761, %v1748
        %vm1764 = vcmask 228352
        %v1765 = vsel %vm1764, %v1763, %v1752
        %v1767 = vlaneseq
        %v1768 = vshrl.u32 %v1767, 7
        %v1769 = vsub.s32 0, %v1768
        %v1770 = vrot.slane %v317, %v1769
        %v1773 = vsel %vm324, %v1765, 0
        %1775 = vmatprep.subr.mxu0 0.0
        %1776 = vmatpush1.msra.mxu0 %v313
        %1777 = vmatprep.subr.mxu0 0.0
        %1778 = vmatpush1.msra.mxu0 %v314
        %1779 = vmatprep.subr.mxu0 0.0
        %1780 = vmatpush1.msra.mxu0 %v315
        %1781 = vmatprep.subr.mxu0 0.0
        %1782 = vmatpush1.msra.mxu0 %v316
        %1783 = vmatprep.subr.mxu0 0.0
        %1784 = vmatpush1.msra.mxu0 0.0
        %1785 = vmatprep.subr.mxu0 0.0
        %1786 = vmatpush1.msra.mxu0 0.0
        %1787 = vmatprep.subr.mxu0 0.0
        %1788 = vmatpush1.msra.mxu0 0.0
        %1789 = vmatprep.subr.mxu0 0.0
        %1790 = vmatpush1.msra.mxu0 0.0
        %1791 = vmatprep.subr.mxu0 0.0
        %1792 = vmatpush1.msra.mxu0 0.0
        %1793 = vmatprep.subr.mxu0 0.0
        %1794 = vmatpush1.msra.mxu0 0.0
        %1795 = vmatprep.subr.mxu0 0.0
        %1796 = vmatpush1.msra.mxu0 0.0
        %1797 = vmatprep.subr.mxu0 0.0
        %1798 = vmatpush1.msra.mxu0 0.0
        %1799 = vmatprep.subr.mxu0 0.0
        %1800 = vmatpush1.msra.mxu0 0.0
        %1801 = vmatprep.subr.mxu0 0.0
        %1802 = vmatpush1.msra.mxu0 0.0
        %1803 = vmatprep.subr.mxu0 0.0
        %1804 = vmatpush1.msra.mxu0 0.0
        %1805 = vmatprep.subr.mxu0 0.0
        %1806 = vmatpush1.msra.mxu0 0.0
        %1807 = vmatprep.subr.mxu0 0.0
        %1808 = vmatpush1.msra.mxu0 0.0
        %1809 = vmatprep.subr.mxu0 0.0
        %1810 = vmatpush1.msra.mxu0 0.0
        %1811 = vmatprep.subr.mxu0 0.0
        %1812 = vmatpush1.msra.mxu0 0.0
        %1813 = vmatprep.subr.mxu0 0.0
        %1814 = vmatpush1.msra.mxu0 0.0
        %1815 = vmatprep.subr.mxu0 0.0
        %1816 = vmatpush1.msra.mxu0 0.0
        %1817 = vmatprep.subr.mxu0 0.0
        %1818 = vmatpush1.msra.mxu0 0.0
        %1819 = vmatprep.subr.mxu0 0.0
        %1820 = vmatpush1.msra.mxu0 0.0
        %1821 = vmatprep.subr.mxu0 0.0
        %1822 = vmatpush1.msra.mxu0 0.0
        %1823 = vmatprep.subr.mxu0 0.0
        %1824 = vmatpush1.msra.mxu0 0.0
        %1825 = vmatprep.subr.mxu0 0.0
        %1826 = vmatpush1.msra.mxu0 0.0
        %1827 = vmatprep.subr.mxu0 0.0
        %1828 = vmatpush1.msra.mxu0 0.0
        %1829 = vmatprep.subr.mxu0 0.0
        %1830 = vmatpush1.msra.mxu0 0.0
        %1831 = vmatprep.subr.mxu0 0.0
        %1832 = vmatpush1.msra.mxu0 0.0
        %1833 = vmatprep.subr.mxu0 0.0
        %1834 = vmatpush1.msra.mxu0 0.0
        %1835 = vmatprep.subr.mxu0 0.0
        %1836 = vmatpush1.msra.mxu0 0.0
        %1837 = vmatprep.subr.mxu0 0.0
        %1838 = vmatpush1.msra.mxu0 0.0
        %1839 = vmatprep.mubr.f32.mxu0 0.0
        %1840 = vmatmul.mubr.f32.gmra.mrb[0].mxu0 %v1773
        %v1841 = vpop.f32.mrb[0].mxu0
        %v1842 = vadd.f32 %v1770, %v1841
        %v1843 = vpop.f32.mrb[0].mxu0
        %1844 = vdwg.mxu0
        %1845 = vst.msk [vmem:[%s299] sm:$0xff] %vm324, %v1842
        %v1846 = vmul.f32 %v1725, 0.125
        %1847 = vst.msk [vmem:[%s306] sm:$0xff] %vm476, %v1846
        %s1848 = sand.u32 %s146, 1
        %s1849 = scalar_lea.sflag [#allocation4], %s1848
        %s1850 = sand.u32 %s146, 1
        %s1851 = smul.addr %s1850, 8
        %s1852 = scalar_lea.vmem [#allocation8], %s1851
        %s1853 = sand.u32 %s172, 1
        %s1854 = scalar_lea.sflag [#allocation10], %s1853
        %s1855 = sand.u32 %s172, 1
        %s1856 = smul.addr %s1855, 8
        %s1857 = scalar_lea.vmem [#allocation9], %s1856
        // Predicated region
        $region53: #{tpu_custom_call.1} parent=39 // pred_check
          %p1858 = pneg %p156
        $region54: #{tpu_custom_call.1} parent=39 // pred_check_branch
          %1860 = sbr.rel (%p1858) target = $region56
        $region55: #{tpu_custom_call.1} parent=39 // pred_region
          %s1862 = ssub.s32 128, 128
          %1863 = vsyncadd %s1849, %s1862
          %s1864 = smul.addr %s28, 128
          %s1865 = scalar_lea.hbm %s5, %s1864
          %s1867 = sshll.u32 %s1852, 4
          %s1868 = int_to_ptr.vmem [resolvable:$true] %s1867
          %1870 = dma.vmem_to_hbm [thread:$0]  %s1868, 128, %s1865, %s1849
        $region56: #{tpu_custom_call.1} parent=39 // pred_fallthru
          _
        // Predicated region
        $region57: #{tpu_custom_call.1} parent=39 // pred_check
          %p1871 = pneg %p182
        $region58: #{tpu_custom_call.1} parent=39 // pred_check_branch
          %1873 = sbr.rel (%p1871) target = $region60
        $region59: #{tpu_custom_call.1} parent=39 // pred_region
          %s1875 = ssub.s32 128, 128
          %1876 = vsyncadd %s1854, %s1875
          %s1877 = smul.addr %s28, 128
          %s1878 = scalar_lea.hbm %s6, %s1877
          %s1880 = sshll.u32 %s1857, 4
          %s1881 = int_to_ptr.vmem [resolvable:$true] %s1880
          %1883 = dma.vmem_to_hbm [thread:$0]  %s1881, 128, %s1878, %s1854
        $region60: #{tpu_custom_call.1} parent=39 // pred_fallthru
          _
      $region40: #{tpu_custom_call.1} parent=5 // pred_fallthru
        _
      %p1884 = scmp.le.s32.totalorder 2, %s23
      // Predicated region
      $region61: #{tpu_custom_call.1} parent=5 // pred_check
        %p1885 = pneg %p1884
      $region62: #{tpu_custom_call.1} parent=5 // pred_check_branch
        %1887 = sbr.rel (%p1885) target = $region64
      $region63: #{tpu_custom_call.1} parent=5 // pred_region
        %s1888 = ssub.s32 %s23, 2
        // Predicated region
        $region65: #{tpu_custom_call.1} parent=63 // pred_check
          %p1889 = pneg %p162
        $region66: #{tpu_custom_call.1} parent=63 // pred_check_branch
          %1891 = sbr.rel (%p1889) target = $region68
        $region67: #{tpu_custom_call.1} parent=63 // pred_region
          %s1892 = sand.u32 %s147, 1
          %s1893 = scalar_lea.sflag [#allocation4], %s1892
          %s1894 = sand.u32 %s147, 1
          %s1895 = smul.addr %s1894, 8
          %s1896 = scalar_lea.vmem [#allocation8], %s1895
          %1897 = dma.done %s1893, 128
        $region68: #{tpu_custom_call.1} parent=63 // pred_fallthru
          _
        // Predicated region
        $region69: #{tpu_custom_call.1} parent=63 // pred_check
          %p1898 = pneg %p188
        $region70: #{tpu_custom_call.1} parent=63 // pred_check_branch
          %1900 = sbr.rel (%p1898) target = $region72
        $region71: #{tpu_custom_call.1} parent=63 // pred_region
          %s1901 = sand.u32 %s173, 1
          %s1902 = scalar_lea.sflag [#allocation10], %s1901
          %s1903 = sand.u32 %s173, 1
          %s1904 = smul.addr %s1903, 8
          %s1905 = scalar_lea.vmem [#allocation9], %s1904
          %1906 = dma.done %s1902, 128
        $region72: #{tpu_custom_call.1} parent=63 // pred_fallthru
          _
      $region64: #{tpu_custom_call.1} parent=5 // pred_fallthru
        _
    $region6: #{tpu_custom_call.1} parent=1 // loop_footer
      %s27 = sadd.s32 1, %s23
    $region7: #{tpu_custom_call.1} parent=1 // loop_footer_branch
      %22 = sbr.rel target = $region3
    $region8: #{tpu_custom_call.1} parent=1 // loop_exit
      _
    %1907 = vsyncpa [#allocation3], 1
    %s1908 = scalar_lea.sflag [#allocation3], 1
    %1909 = vsyncpa %s1908, 1
    %1910 = vsyncpa [#allocation6], 1
    %1911 = vsyncpa [#allocation4], 1
    %s1912 = scalar_lea.sflag [#allocation4], 1
    %1913 = vsyncpa %s1912, 1
    %1914 = vsyncpa [#allocation10], 1
    %s1915 = scalar_lea.sflag [#allocation10], 1
    %1916 = vsyncpa %s1915, 1

</llo_original>
